<compile_context>
chip_gen: v7x
topology: tpu7x:2x2x1
jax: 0.10.0
libtpu: 0.0.40
codegen_flags: <defaults>
</compile_context>

<pallas_src>
import functools

import jax
import jax.numpy as jnp
import numpy as np
from jax import lax
from jax.experimental import pallas as pl
from jax.experimental.pallas import tpu as pltpu


def _attn_softmax(scores):
    """Numerically stable softmax over the last axis (f32 in / f32 out)."""
    scores = scores - jnp.max(scores, axis=-1, keepdims=True)
    p = jnp.exp(scores)
    denom = jnp.sum(p, axis=-1, keepdims=True)
    # Reciprocal on the EUP slot instead of a VPU divide.
    return p * pl.reciprocal(denom, approx=True)


def _window_attention(qkv, *, embed_dim, num_heads, local_size, n_win,
                      mxu_dtype):
    """Per-head attention over complete windows.

    qkv: (n_win * local_size, 3*E) rows (matmul dtype, bias already added,
    Q pre-scaled).  Returns (n_win * local_size, E) head outputs concatenated
    lane-dense along the embedding axis (matmul dtype).
    """
    E = embed_dim
    H = num_heads
    hd = E // H
    ls = local_size
    L = n_win * ls

    head_outs = []
    for h in range(H):
        lo = h * hd
        q3 = qkv[:, lo:lo + hd].reshape(n_win, ls, hd)
        k3 = qkv[:, E + lo:E + lo + hd].reshape(n_win, ls, hd)
        v3 = qkv[:, 2 * E + lo:2 * E + lo + hd].reshape(n_win, ls, hd)
        # Contract the last dims directly (no explicit transpose of K).
        s = jnp.einsum('wqd,wkd->wqk', q3, k3,
                       preferred_element_type=jnp.float32)      # (W, ls, ls)
        p = _attn_softmax(s)
        oh = jnp.einsum('wqk,wkd->wqd', p.astype(mxu_dtype), v3,
                        preferred_element_type=jnp.float32)     # (W, ls, hd)
        head_outs.append(oh.reshape(L, hd).astype(mxu_dtype))
    # One lane concatenation per block instead of H masked partial stores.
    return jnp.concatenate(head_outs, axis=-1)                  # (L, E)


def _speech_msa_kernel(x_ref, wqkv_ref, bqkv_ref, wo_ref, bo_ref, o_ref, *,
                       embed_dim, num_heads, local_size, n_win_blk, batched):
    """One grid point = one (batch, window-block) tile of n_win_blk windows.

    Fuses: QKV projection (single large-M matmul) -> window-batched per-head
    scaled dot-product attention -> single K=E output projection.
    """
    E = embed_dim
    ls = local_size
    wb = n_win_blk
    mxu_dtype = wqkv_ref.dtype           # bf16 when matmul_dtype=bf16, else f32

    x = x_ref[0]                                                # (L, E)

    # Fused QKV projection over the whole window block (M = L rows on the
    # MXU).  Bias-add and cast are fused so only one (L, 3E) value is live;
    # the 1/sqrt(head_dim) scaling of Q is pre-folded into wqkv / bqkv.
    qkv = (jnp.dot(x, wqkv_ref[...], preferred_element_type=jnp.float32)
           + bqkv_ref[...]).astype(mxu_dtype)                   # (L, 3E)

    if batched:
        attn = _window_attention(qkv, embed_dim=E, num_heads=num_heads,
                                 local_size=ls, n_win=wb, mxu_dtype=mxu_dtype)
        out = jnp.dot(attn, wo_ref[...],
                      preferred_element_type=jnp.float32) + bo_ref[...]
        o_ref[0] = out.astype(o_ref.dtype)
    else:
        # Window size not a multiple of the sublane packing: avoid
        # sublane-splitting reshapes and process one window at a time with
        # static row offsets.  Stores are full lane width (E lanes).
        for w in range(wb):
            r0 = w * ls
            attn = _window_attention(qkv[r0:r0 + ls, :], embed_dim=E,
                                     num_heads=num_heads, local_size=ls,
                                     n_win=1, mxu_dtype=mxu_dtype)
            out = jnp.dot(attn, wo_ref[...],
                          preferred_element_type=jnp.float32) + bo_ref[...]
            o_ref[0, r0:r0 + ls, :] = out.astype(o_ref.dtype)


def _vmem_capacity_bytes():
    try:
        return int(pltpu.get_tpu_info().vmem_capacity_bytes)
    except Exception:                  # conservative default (v7x-sized VMEM)
        return 64 * 1024 * 1024


def _choose_window_block(n_win, ls, E, in_isz, out_isz, pack, tile_budget,
                         batch):
    """Largest #windows per grid step that is layout-legal and fits VMEM."""
    aligned = (ls % pack == 0)
    row_align = max(8, pack)           # second-minor BlockSpec divisibility
    fits = []
    for wb in range(1, n_win + 1):
        if n_win % wb:
            continue
        rows = wb * ls
        if rows % row_align and wb != n_win:
            continue
        if aligned:
            if rows > 8192 and wb != n_win:
                continue
        else:
            if wb > 8 and wb != n_win:
                continue               # per-window Python unroll in fallback
        est = (2 * rows * E * in_isz          # x tile (double buffered)
               + 2 * rows * E * out_isz       # out tile (double buffered)
               + rows * 3 * E * 4             # f32 qkv accumulator (transient)
               + rows * 3 * E * in_isz        # qkv in matmul dtype
               + 2 * rows * E * in_isz        # head outputs + concatenated attn
               + rows * E * 4                 # f32 output before cast
               + 2 * wb * ls * ls * 4)        # scores + probs (one head live)
        if est <= tile_budget:
            fits.append(wb)
    if not fits:
        return n_win                   # whole padded sequence: always legal

    def steps(wbc):
        return batch * (n_win // wbc)

    # Prefer >= 4 evenly-splittable grid steps (keeps both v7x TensorCores
    # busy with prefetch overlap), then >= 2 steps, then the largest block.
    even = [w for w in fits if steps(w) >= 4 and steps(w) % 2 == 0]
    if even:
        return max(even)
    two = [w for w in fits if steps(w) >= 2]
    if two:
        return max(two)
    return max(fits)


def speech_msa(x, params, *, num_heads, local_size, matmul_dtype=None):
    """Pallas implementation of Speech_MSA.forward (overlap=False path).

    params = (wqkv, bqkv, wo, bo) with wqkv: (E, 3E), bqkv: (3E,), wo: (E, E),
    bo: (E,).  matmul_dtype (e.g. jnp.bfloat16) optionally casts x and the
    weights for the MXU; softmax and accumulation stay in f32.
    """
    wqkv, bqkv, wo, bo = params
    B, T, E = x.shape
    assert E % num_heads == 0, 'embed_dim must be divisible by num_heads'
    out_dtype = x.dtype
    hd = E // num_heads
    scaling = float(hd) ** (-0.5)

    # Fold the Q scaling into the Q columns of the QKV projection (one-time
    # host transform; removes an (L, E) VPU multiply per block in the kernel).
    wqkv = wqkv.astype(jnp.float32).at[:, :E].multiply(scaling)
    bqkv = bqkv.astype(jnp.float32).at[:E].multiply(scaling)
    wo = wo.astype(jnp.float32)
    bo = bo.astype(jnp.float32)

    if matmul_dtype is not None:
        x = x.astype(matmul_dtype)
        wqkv = wqkv.astype(matmul_dtype)
        wo = wo.astype(matmul_dtype)
    # Biases stay f32: they are added to the f32 MXU accumulators.

    if local_size == -1:
        ls, pad = T, 0                 # global attention: one window, no pad
    else:
        ls = int(local_size)
        rem = T % ls
        pad = (ls - rem) if rem else 0
        if pad:
            # Matches F.pad(x, (0, 0, 0, pad)): zero rows participate unmasked
            # in the softmax of the last window, exactly like the PyTorch
            # reference.  This is intentional.
            x = jnp.pad(x, ((0, 0), (0, pad), (0, 0)))
    Tp = x.shape[1]
    n_win = Tp // ls

    in_isz = jnp.dtype(x.dtype).itemsize
    out_isz = jnp.dtype(out_dtype).itemsize
    w_isz = jnp.dtype(wqkv.dtype).itemsize
    pack = 16 if in_isz == 2 else 8    # sublane packing of the matmul dtype

    vmem_cap = _vmem_capacity_bytes()
    vmem_limit = int(vmem_cap * 0.85)  # no hard 100 MiB cap
    wbytes = (E * 3 * E + E * E) * w_isz + 4 * E * 4   # weights + f32 biases

    bqkv2 = bqkv.reshape(1, 3 * E)
    bo2 = bo.reshape(1, E)

    # Advisory scheduler hint for the whole call.
    flops = 8 * B * Tp * E * E + 4 * B * Tp * ls * E
    transc = B * num_heads * Tp * ls
    bytes_acc = B * Tp * E * (in_isz + out_isz) + wbytes
    cost = pl.CostEstimate(flops=int(flops), transcendentals=int(transc),
                           bytes_accessed=int(bytes_acc))

    def _call(single_buffer_weights):
        n_weight_bufs = 1 if single_buffer_weights else 2
        tile_budget = max(int(vmem_limit * 0.9) - n_weight_bufs * wbytes, 1)
        wb = _choose_window_block(n_win, ls, E, in_isz, out_isz, pack,
                                  tile_budget, B)
        n_blk = n_win // wb
        L = wb * ls
        batched = (ls % pack == 0) or (wb == 1)
        kernel = functools.partial(
            _speech_msa_kernel, embed_dim=E, num_heads=num_heads,
            local_size=ls, n_win_blk=wb, batched=batched)
        wkw = ({'pipeline_mode': pl.Buffered(1)} if single_buffer_weights
               else {})
        return pl.pallas_call(
            kernel,
            out_shape=jax.ShapeDtypeStruct((B, Tp, E), out_dtype),
            grid=(B, n_blk),
            in_specs=[
                pl.BlockSpec((1, L, E), lambda b, w: (b, w, 0)),        # x
                pl.BlockSpec((E, 3 * E), lambda b, w: (0, 0), **wkw),   # W_qkv
                pl.BlockSpec((1, 3 * E), lambda b, w: (0, 0), **wkw),   # b_qkv
                pl.BlockSpec((E, E), lambda b, w: (0, 0), **wkw),       # W_out
                pl.BlockSpec((1, E), lambda b, w: (0, 0), **wkw),       # b_out
            ],
            out_specs=pl.BlockSpec((1, L, E), lambda b, w: (b, w, 0)),
            compiler_params=pltpu.CompilerParams(
                dimension_semantics=("parallel", "parallel"),
                vmem_limit_bytes=vmem_limit),
            cost_estimate=cost,
        )(x, wqkv, bqkv2, wo, bo2)

    # Try single-buffered invariant weights first; fall back to the default
    # double-buffering (which re-plans its block size for the bigger weight
    # footprint).  Note: under an outer jit, lowering errors may surface
    # lazily and skip this fallback — call eagerly or force _call(False) then.
    try:
        out = _call(True)
    except Exception:
        out = _call(False)

    if pad:
        out = out[:, :T, :]
    return out


def speech_msa_ref(x, params, *, num_heads, local_size):
    """Pure-JAX reference reproducing the PyTorch forward semantics."""
    wqkv, bqkv, wo, bo = params
    B, T, E = x.shape
    hd = E // num_heads
    scaling = float(hd) ** (-0.5)

    if local_size == -1:
        ls = T
    else:
        ls = local_size
        need = T % ls
        if need:
            x = jnp.pad(x, ((0, 0), (0, ls - need), (0, 0)))
    Tp = x.shape[1]

    qkv = x @ wqkv + bqkv
    q, k, v = jnp.split(qkv, 3, axis=-1)
    q = q * scaling

    def to_heads(t):
        return t.reshape(B, Tp, num_heads, hd).transpose(0, 2, 1, 3).reshape(
            B * num_heads, Tp, hd)

    q, k, v = to_heads(q), to_heads(k), to_heads(v)
    q = q.reshape(-1, ls, hd)
    k = k.reshape(-1, ls, hd)
    v = v.reshape(-1, ls, hd)
    w = jax.nn.softmax(jnp.einsum('bld,bmd->blm', q, k), axis=-1)
    o = jnp.einsum('blm,bmd->bld', w, v)
    o = o.reshape(B, num_heads, Tp, hd).transpose(0, 2, 1, 3).reshape(B, Tp, E)
    o = o @ wo + bo
    return o[:, :T, :]


if __name__ == "__main__":
    B, T, E, H, LOCAL = 2, 12, 32, 4, 8   # T=12 -> padded to 16 (2 windows of 8)
    key = jax.random.PRNGKey(0)
    k1, k2, k3, k4, k5 = jax.random.split(key, 5)

    bound = 1.0 / (E ** 0.5)
    wqkv = jax.random.uniform(k1, (E, 3 * E), jnp.float32, -bound, bound)
    bqkv = jax.random.uniform(k2, (3 * E,), jnp.float32, -bound, bound)
    wo = jax.random.uniform(k3, (E, E), jnp.float32, -bound, bound)
    bo = jax.random.uniform(k4, (E,), jnp.float32, -bound, bound)
    x = jax.random.normal(k5, (B, T, E), jnp.float32)
    params = (wqkv, bqkv, wo, bo)

    # 1) Local windowed attention, f32 matmuls.
    out = jax.block_until_ready(
        speech_msa(x, params, num_heads=H, local_size=LOCAL))
    assert out.shape == (B, T, E)
    ref = speech_msa_ref(x, params, num_heads=H, local_size=LOCAL)
    # approx reciprocal in the softmax => slightly looser than exact-f32 tol.
    np.testing.assert_allclose(np.asarray(out), np.asarray(ref),
                               rtol=2e-3, atol=2e-3)

    # 2) Global attention path (local_size == -1), f32 matmuls.
    out_g = jax.block_until_ready(
        speech_msa(x, params, num_heads=H, local_size=-1))
    ref_g = speech_msa_ref(x, params, num_heads=H, local_size=-1)
    np.testing.assert_allclose(np.asarray(out_g), np.asarray(ref_g),
                               rtol=2e-3, atol=2e-3)

    # 3) Local windowed attention with bf16 MXU inputs (f32 softmax / accum).
    out_bf = jax.block_until_ready(
        speech_msa(x, params, num_heads=H, local_size=LOCAL,
                   matmul_dtype=jnp.bfloat16))
    np.testing.assert_allclose(np.asarray(out_bf), np.asarray(ref),
                               rtol=5e-2, atol=5e-2)

    print("KERNEL_OK")
</pallas_src>

<mosaic_0001>
module attributes {stable_mosaic.version = 11 : i64} {
  func.func @_speech_msa_kernel(%arg0: i32, %arg1: i32, %arg2: memref<1x8x32xf32, #tpu.memory_space<vmem>>, %arg3: memref<32x96xf32, #tpu.memory_space<vmem>>, %arg4: memref<1x96xf32, #tpu.memory_space<vmem>>, %arg5: memref<32x32xf32, #tpu.memory_space<vmem>>, %arg6: memref<1x32xf32, #tpu.memory_space<vmem>>, %arg7: memref<1x8x32xf32, #tpu.memory_space<vmem>>) attributes {dimension_semantics = [#tpu.dimension_semantics<parallel>, #tpu.dimension_semantics<parallel>], iteration_bounds = array<i64: 2, 2>, scalar_prefetch = 0 : i64, scratch_operands = 0 : i64, tpu.core_type = #tpu.core_type<tc>, window_params = [{transform_indices = @transform_0, window_bounds = array<i64: 1, 8, 32>}, {pipeline_mode = #tpu.pipeline_mode<synchronous>, transform_indices = @transform_1, window_bounds = array<i64: 32, 96>}, {pipeline_mode = #tpu.pipeline_mode<synchronous>, transform_indices = @transform_2, window_bounds = array<i64: 1, 96>}, {pipeline_mode = #tpu.pipeline_mode<synchronous>, transform_indices = @transform_3, window_bounds = array<i64: 32, 32>}, {pipeline_mode = #tpu.pipeline_mode<synchronous>, transform_indices = @transform_4, window_bounds = array<i64: 1, 32>}, {transform_indices = @transform_5, window_bounds = array<i64: 1, 8, 32>}]} {
    %c0 = arith.constant 0 : index
    %c0_0 = arith.constant 0 : index
    %c0_1 = arith.constant 0 : index
    %0 = vector.load %arg2[%c0, %c0_0, %c0_1] : memref<1x8x32xf32, #tpu.memory_space<vmem>>, vector<1x8x32xf32>
    %1 = vector.shape_cast %0 : vector<1x8x32xf32> to vector<8x32xf32>
    %c0_2 = arith.constant 0 : index
    %c0_3 = arith.constant 0 : index
    %2 = vector.load %arg3[%c0_2, %c0_3] : memref<32x96xf32, #tpu.memory_space<vmem>>, vector<32x96xf32>
    %cst = arith.constant dense<0.000000e+00> : vector<8x96xf32>
    %3 = tpu.matmul %1, %2, %cst {dimension_numbers = #tpu.dot_dimension_numbers<[1], [0], [0], [1], [0, 0, 1, 1], [], []>} : vector<8x32xf32>, vector<32x96xf32>, vector<8x96xf32> -> vector<8x96xf32>
    %c0_4 = arith.constant 0 : index
    %c0_5 = arith.constant 0 : index
    %4 = vector.load %arg4[%c0_4, %c0_5] : memref<1x96xf32, #tpu.memory_space<vmem>>, vector<1x96xf32>
    %5 = vector.broadcast %4 : vector<1x96xf32> to vector<8x96xf32>
    %6 = arith.addf %3, %5 : vector<8x96xf32>
    %7 = vector.extract_strided_slice %6 {offsets = [0, 0], sizes = [8, 8], strides = [1, 1]} : vector<8x96xf32> to vector<8x8xf32>
    %8 = vector.shape_cast %7 : vector<8x8xf32> to vector<1x8x8xf32>
    %9 = vector.extract_strided_slice %6 {offsets = [0, 32], sizes = [8, 8], strides = [1, 1]} : vector<8x96xf32> to vector<8x8xf32>
    %10 = vector.shape_cast %9 : vector<8x8xf32> to vector<1x8x8xf32>
    %11 = vector.extract_strided_slice %6 {offsets = [0, 64], sizes = [8, 8], strides = [1, 1]} : vector<8x96xf32> to vector<8x8xf32>
    %12 = vector.shape_cast %11 : vector<8x8xf32> to vector<1x8x8xf32>
    "tpu.trace_start"() <{level = 10 : i32, message = "wqd,wkd->wqk"}> : () -> ()
    %cst_6 = arith.constant dense<0.000000e+00> : vector<1x8x8xf32>
    %13 = tpu.matmul %8, %10, %cst_6 {dimension_numbers = #tpu.dot_dimension_numbers<[2], [2], [1], [1], [0, 0, 0, 1, 1, 1], [0], [0]>} : vector<1x8x8xf32>, vector<1x8x8xf32>, vector<1x8x8xf32> -> vector<1x8x8xf32>
    "tpu.trace_stop"() : () -> ()
    %cst_7 = arith.constant dense<0xFF800000> : vector<1x8xf32>
    %14 = vector.multi_reduction <maximumf>, %13, %cst_7 [2] : vector<1x8x8xf32> to vector<1x8xf32>
    %15 = vector.shape_cast %14 : vector<1x8xf32> to vector<1x8x1xf32>
    %16 = vector.broadcast %15 : vector<1x8x1xf32> to vector<1x8x8xf32>
    %17 = arith.subf %13, %16 : vector<1x8x8xf32>
    %18 = math.exp %17 : vector<1x8x8xf32>
    %cst_8 = arith.constant dense<0.000000e+00> : vector<1x8xf32>
    %19 = vector.multi_reduction <add>, %18, %cst_8 [2] : vector<1x8x8xf32> to vector<1x8xf32>
    %20 = vector.shape_cast %19 : vector<1x8xf32> to vector<1x8x1xf32>
    %21 = tpu.reciprocal %20 {approx = true} : vector<1x8x1xf32> -> vector<1x8x1xf32>
    %22 = vector.broadcast %21 : vector<1x8x1xf32> to vector<1x8x8xf32>
    %23 = arith.mulf %18, %22 : vector<1x8x8xf32>
    "tpu.trace_start"() <{level = 10 : i32, message = "wqk,wkd->wqd"}> : () -> ()
    %cst_9 = arith.constant dense<0.000000e+00> : vector<1x8x8xf32>
    %24 = tpu.matmul %23, %12, %cst_9 {dimension_numbers = #tpu.dot_dimension_numbers<[2], [1], [1], [2], [0, 0, 0, 1, 1, 2], [0], [0]>} : vector<1x8x8xf32>, vector<1x8x8xf32>, vector<1x8x8xf32> -> vector<1x8x8xf32>
    "tpu.trace_stop"() : () -> ()
    %25 = vector.shape_cast %24 : vector<1x8x8xf32> to vector<8x8xf32>
    %26 = vector.extract_strided_slice %6 {offsets = [0, 8], sizes = [8, 8], strides = [1, 1]} : vector<8x96xf32> to vector<8x8xf32>
    %27 = vector.shape_cast %26 : vector<8x8xf32> to vector<1x8x8xf32>
    %28 = vector.extract_strided_slice %6 {offsets = [0, 40], sizes = [8, 8], strides = [1, 1]} : vector<8x96xf32> to vector<8x8xf32>
    %29 = vector.shape_cast %28 : vector<8x8xf32> to vector<1x8x8xf32>
    %30 = vector.extract_strided_slice %6 {offsets = [0, 72], sizes = [8, 8], strides = [1, 1]} : vector<8x96xf32> to vector<8x8xf32>
    %31 = vector.shape_cast %30 : vector<8x8xf32> to vector<1x8x8xf32>
    "tpu.trace_start"() <{level = 10 : i32, message = "wqd,wkd->wqk"}> : () -> ()
    %cst_10 = arith.constant dense<0.000000e+00> : vector<1x8x8xf32>
    %32 = tpu.matmul %27, %29, %cst_10 {dimension_numbers = #tpu.dot_dimension_numbers<[2], [2], [1], [1], [0, 0, 0, 1, 1, 1], [0], [0]>} : vector<1x8x8xf32>, vector<1x8x8xf32>, vector<1x8x8xf32> -> vector<1x8x8xf32>
    "tpu.trace_stop"() : () -> ()
    %cst_11 = arith.constant dense<0xFF800000> : vector<1x8xf32>
    %33 = vector.multi_reduction <maximumf>, %32, %cst_11 [2] : vector<1x8x8xf32> to vector<1x8xf32>
    %34 = vector.shape_cast %33 : vector<1x8xf32> to vector<1x8x1xf32>
    %35 = vector.broadcast %34 : vector<1x8x1xf32> to vector<1x8x8xf32>
    %36 = arith.subf %32, %35 : vector<1x8x8xf32>
    %37 = math.exp %36 : vector<1x8x8xf32>
    %cst_12 = arith.constant dense<0.000000e+00> : vector<1x8xf32>
    %38 = vector.multi_reduction <add>, %37, %cst_12 [2] : vector<1x8x8xf32> to vector<1x8xf32>
    %39 = vector.shape_cast %38 : vector<1x8xf32> to vector<1x8x1xf32>
    %40 = tpu.reciprocal %39 {approx = true} : vector<1x8x1xf32> -> vector<1x8x1xf32>
    %41 = vector.broadcast %40 : vector<1x8x1xf32> to vector<1x8x8xf32>
    %42 = arith.mulf %37, %41 : vector<1x8x8xf32>
    "tpu.trace_start"() <{level = 10 : i32, message = "wqk,wkd->wqd"}> : () -> ()
    %cst_13 = arith.constant dense<0.000000e+00> : vector<1x8x8xf32>
    %43 = tpu.matmul %42, %31, %cst_13 {dimension_numbers = #tpu.dot_dimension_numbers<[2], [1], [1], [2], [0, 0, 0, 1, 1, 2], [0], [0]>} : vector<1x8x8xf32>, vector<1x8x8xf32>, vector<1x8x8xf32> -> vector<1x8x8xf32>
    "tpu.trace_stop"() : () -> ()
    %44 = vector.shape_cast %43 : vector<1x8x8xf32> to vector<8x8xf32>
    %45 = vector.extract_strided_slice %6 {offsets = [0, 16], sizes = [8, 8], strides = [1, 1]} : vector<8x96xf32> to vector<8x8xf32>
    %46 = vector.shape_cast %45 : vector<8x8xf32> to vector<1x8x8xf32>
    %47 = vector.extract_strided_slice %6 {offsets = [0, 48], sizes = [8, 8], strides = [1, 1]} : vector<8x96xf32> to vector<8x8xf32>
    %48 = vector.shape_cast %47 : vector<8x8xf32> to vector<1x8x8xf32>
    %49 = vector.extract_strided_slice %6 {offsets = [0, 80], sizes = [8, 8], strides = [1, 1]} : vector<8x96xf32> to vector<8x8xf32>
    %50 = vector.shape_cast %49 : vector<8x8xf32> to vector<1x8x8xf32>
    "tpu.trace_start"() <{level = 10 : i32, message = "wqd,wkd->wqk"}> : () -> ()
    %cst_14 = arith.constant dense<0.000000e+00> : vector<1x8x8xf32>
    %51 = tpu.matmul %46, %48, %cst_14 {dimension_numbers = #tpu.dot_dimension_numbers<[2], [2], [1], [1], [0, 0, 0, 1, 1, 1], [0], [0]>} : vector<1x8x8xf32>, vector<1x8x8xf32>, vector<1x8x8xf32> -> vector<1x8x8xf32>
    "tpu.trace_stop"() : () -> ()
    %cst_15 = arith.constant dense<0xFF800000> : vector<1x8xf32>
    %52 = vector.multi_reduction <maximumf>, %51, %cst_15 [2] : vector<1x8x8xf32> to vector<1x8xf32>
    %53 = vector.shape_cast %52 : vector<1x8xf32> to vector<1x8x1xf32>
    %54 = vector.broadcast %53 : vector<1x8x1xf32> to vector<1x8x8xf32>
    %55 = arith.subf %51, %54 : vector<1x8x8xf32>
    %56 = math.exp %55 : vector<1x8x8xf32>
    %cst_16 = arith.constant dense<0.000000e+00> : vector<1x8xf32>
    %57 = vector.multi_reduction <add>, %56, %cst_16 [2] : vector<1x8x8xf32> to vector<1x8xf32>
    %58 = vector.shape_cast %57 : vector<1x8xf32> to vector<1x8x1xf32>
    %59 = tpu.reciprocal %58 {approx = true} : vector<1x8x1xf32> -> vector<1x8x1xf32>
    %60 = vector.broadcast %59 : vector<1x8x1xf32> to vector<1x8x8xf32>
    %61 = arith.mulf %56, %60 : vector<1x8x8xf32>
    "tpu.trace_start"() <{level = 10 : i32, message = "wqk,wkd->wqd"}> : () -> ()
    %cst_17 = arith.constant dense<0.000000e+00> : vector<1x8x8xf32>
    %62 = tpu.matmul %61, %50, %cst_17 {dimension_numbers = #tpu.dot_dimension_numbers<[2], [1], [1], [2], [0, 0, 0, 1, 1, 2], [0], [0]>} : vector<1x8x8xf32>, vector<1x8x8xf32>, vector<1x8x8xf32> -> vector<1x8x8xf32>
    "tpu.trace_stop"() : () -> ()
    %63 = vector.shape_cast %62 : vector<1x8x8xf32> to vector<8x8xf32>
    %64 = vector.extract_strided_slice %6 {offsets = [0, 24], sizes = [8, 8], strides = [1, 1]} : vector<8x96xf32> to vector<8x8xf32>
    %65 = vector.shape_cast %64 : vector<8x8xf32> to vector<1x8x8xf32>
    %66 = vector.extract_strided_slice %6 {offsets = [0, 56], sizes = [8, 8], strides = [1, 1]} : vector<8x96xf32> to vector<8x8xf32>
    %67 = vector.shape_cast %66 : vector<8x8xf32> to vector<1x8x8xf32>
    %68 = vector.extract_strided_slice %6 {offsets = [0, 88], sizes = [8, 8], strides = [1, 1]} : vector<8x96xf32> to vector<8x8xf32>
    %69 = vector.shape_cast %68 : vector<8x8xf32> to vector<1x8x8xf32>
    "tpu.trace_start"() <{level = 10 : i32, message = "wqd,wkd->wqk"}> : () -> ()
    %cst_18 = arith.constant dense<0.000000e+00> : vector<1x8x8xf32>
    %70 = tpu.matmul %65, %67, %cst_18 {dimension_numbers = #tpu.dot_dimension_numbers<[2], [2], [1], [1], [0, 0, 0, 1, 1, 1], [0], [0]>} : vector<1x8x8xf32>, vector<1x8x8xf32>, vector<1x8x8xf32> -> vector<1x8x8xf32>
    "tpu.trace_stop"() : () -> ()
    %cst_19 = arith.constant dense<0xFF800000> : vector<1x8xf32>
    %71 = vector.multi_reduction <maximumf>, %70, %cst_19 [2] : vector<1x8x8xf32> to vector<1x8xf32>
    %72 = vector.shape_cast %71 : vector<1x8xf32> to vector<1x8x1xf32>
    %73 = vector.broadcast %72 : vector<1x8x1xf32> to vector<1x8x8xf32>
    %74 = arith.subf %70, %73 : vector<1x8x8xf32>
    %75 = math.exp %74 : vector<1x8x8xf32>
    %cst_20 = arith.constant dense<0.000000e+00> : vector<1x8xf32>
    %76 = vector.multi_reduction <add>, %75, %cst_20 [2] : vector<1x8x8xf32> to vector<1x8xf32>
    %77 = vector.shape_cast %76 : vector<1x8xf32> to vector<1x8x1xf32>
    %78 = tpu.reciprocal %77 {approx = true} : vector<1x8x1xf32> -> vector<1x8x1xf32>
    %79 = vector.broadcast %78 : vector<1x8x1xf32> to vector<1x8x8xf32>
    %80 = arith.mulf %75, %79 : vector<1x8x8xf32>
    "tpu.trace_start"() <{level = 10 : i32, message = "wqk,wkd->wqd"}> : () -> ()
    %cst_21 = arith.constant dense<0.000000e+00> : vector<1x8x8xf32>
    %81 = tpu.matmul %80, %69, %cst_21 {dimension_numbers = #tpu.dot_dimension_numbers<[2], [1], [1], [2], [0, 0, 0, 1, 1, 2], [0], [0]>} : vector<1x8x8xf32>, vector<1x8x8xf32>, vector<1x8x8xf32> -> vector<1x8x8xf32>
    "tpu.trace_stop"() : () -> ()
    %82 = vector.shape_cast %81 : vector<1x8x8xf32> to vector<8x8xf32>
    %83 = tpu.concatenate %25, %44, %63, %82 in 1 : vector<8x8xf32>, vector<8x8xf32>, vector<8x8xf32>, vector<8x8xf32> -> vector<8x32xf32>
    %c0_22 = arith.constant 0 : index
    %c0_23 = arith.constant 0 : index
    %84 = vector.load %arg5[%c0_22, %c0_23] : memref<32x32xf32, #tpu.memory_space<vmem>>, vector<32x32xf32>
    %cst_24 = arith.constant dense<0.000000e+00> : vector<8x32xf32>
    %85 = tpu.matmul %83, %84, %cst_24 {dimension_numbers = #tpu.dot_dimension_numbers<[1], [0], [0], [1], [0, 0, 1, 1], [], []>} : vector<8x32xf32>, vector<32x32xf32>, vector<8x32xf32> -> vector<8x32xf32>
    %c0_25 = arith.constant 0 : index
    %c0_26 = arith.constant 0 : index
    %86 = vector.load %arg6[%c0_25, %c0_26] : memref<1x32xf32, #tpu.memory_space<vmem>>, vector<1x32xf32>
    %87 = vector.broadcast %86 : vector<1x32xf32> to vector<8x32xf32>
    %88 = arith.addf %85, %87 : vector<8x32xf32>
    %c0_27 = arith.constant 0 : index
    %c0_28 = arith.constant 0 : index
    %c0_29 = arith.constant 0 : index
    %89 = vector.load %arg7[%c0_27, %c0_28, %c0_29] : memref<1x8x32xf32, #tpu.memory_space<vmem>>, vector<1x8x32xf32>
    %90 = vector.shape_cast %89 : vector<1x8x32xf32> to vector<8x32xf32>
    %91 = vector.shape_cast %88 : vector<8x32xf32> to vector<1x8x32xf32>
    tpu.vector_store %arg7[%c0_27, %c0_28, %c0_29], %91 {strides = array<i32>} : memref<1x8x32xf32, #tpu.memory_space<vmem>>, vector<1x8x32xf32>,
    return
  }
  func.func @transform_0(%arg0: i32, %arg1: i32) -> (i32, i32, i32) {
    %c0_i32 = arith.constant 0 : i32
    %c0_i32_0 = arith.constant 0 : i32
    return %arg0, %arg1, %c0_i32 : i32, i32, i32
  }
  func.func @transform_1(%arg0: i32, %arg1: i32) -> (i32, i32) {
    %c0_i32 = arith.constant 0 : i32
    %c0_i32_0 = arith.constant 0 : i32
    %c0_i32_1 = arith.constant 0 : i32
    return %c0_i32, %c0_i32_0 : i32, i32
  }
  func.func @transform_2(%arg0: i32, %arg1: i32) -> (i32, i32) {
    %c0_i32 = arith.constant 0 : i32
    %c0_i32_0 = arith.constant 0 : i32
    %c0_i32_1 = arith.constant 0 : i32
    return %c0_i32, %c0_i32_0 : i32, i32
  }
  func.func @transform_3(%arg0: i32, %arg1: i32) -> (i32, i32) {
    %c0_i32 = arith.constant 0 : i32
    %c0_i32_0 = arith.constant 0 : i32
    %c0_i32_1 = arith.constant 0 : i32
    return %c0_i32, %c0_i32_0 : i32, i32
  }
  func.func @transform_4(%arg0: i32, %arg1: i32) -> (i32, i32) {
    %c0_i32 = arith.constant 0 : i32
    %c0_i32_0 = arith.constant 0 : i32
    %c0_i32_1 = arith.constant 0 : i32
    return %c0_i32, %c0_i32_0 : i32, i32
  }
  func.func @transform_5(%arg0: i32, %arg1: i32) -> (i32, i32, i32) {
    %c0_i32 = arith.constant 0 : i32
    %c0_i32_0 = arith.constant 0 : i32
    return %arg0, %arg1, %c0_i32 : i32, i32, i32
  }
}

module attributes {stable_mosaic.version = 11 : i64} {
  func.func @_speech_msa_kernel(%arg0: i32, %arg1: i32, %arg2: memref<1x8x32xf32, #tpu.memory_space<vmem>>, %arg3: memref<32x96xf32, #tpu.memory_space<vmem>>, %arg4: memref<1x96xf32, #tpu.memory_space<vmem>>, %arg5: memref<32x32xf32, #tpu.memory_space<vmem>>, %arg6: memref<1x32xf32, #tpu.memory_space<vmem>>, %arg7: memref<1x8x32xf32, #tpu.memory_space<vmem>>) attributes {dimension_semantics = [#tpu.dimension_semantics<parallel>, #tpu.dimension_semantics<parallel>], iteration_bounds = array<i64: 2, 2>, scalar_prefetch = 0 : i64, scratch_operands = 0 : i64, tpu.core_type = #tpu.core_type<tc>, window_params = [{transform_indices = @transform_0, window_bounds = array<i64: 1, 8, 32>}, {pipeline_mode = #tpu.pipeline_mode<synchronous>, transform_indices = @transform_1, window_bounds = array<i64: 32, 96>}, {pipeline_mode = #tpu.pipeline_mode<synchronous>, transform_indices = @transform_2, window_bounds = array<i64: 1, 96>}, {pipeline_mode = #tpu.pipeline_mode<synchronous>, transform_indices = @transform_3, window_bounds = array<i64: 32, 32>}, {pipeline_mode = #tpu.pipeline_mode<synchronous>, transform_indices = @transform_4, window_bounds = array<i64: 1, 32>}, {transform_indices = @transform_5, window_bounds = array<i64: 1, 8, 32>}]} {
    %c0 = arith.constant 0 : index
    %c0_0 = arith.constant 0 : index
    %c0_1 = arith.constant 0 : index
    %0 = vector.load %arg2[%c0, %c0_0, %c0_1] : memref<1x8x32xf32, #tpu.memory_space<vmem>>, vector<1x8x32xf32>
    %1 = vector.shape_cast %0 : vector<1x8x32xf32> to vector<8x32xf32>
    %c0_2 = arith.constant 0 : index
    %c0_3 = arith.constant 0 : index
    %2 = vector.load %arg3[%c0_2, %c0_3] : memref<32x96xf32, #tpu.memory_space<vmem>>, vector<32x96xf32>
    %cst = arith.constant dense<0.000000e+00> : vector<8x96xf32>
    %3 = tpu.matmul %1, %2, %cst {dimension_numbers = #tpu.dot_dimension_numbers<[1], [0], [0], [1], [0, 0, 1, 1], [], []>} : vector<8x32xf32>, vector<32x96xf32>, vector<8x96xf32> -> vector<8x96xf32>
    %c0_4 = arith.constant 0 : index
    %c0_5 = arith.constant 0 : index
    %4 = vector.load %arg4[%c0_4, %c0_5] : memref<1x96xf32, #tpu.memory_space<vmem>>, vector<1x96xf32>
    %5 = vector.broadcast %4 : vector<1x96xf32> to vector<8x96xf32>
    %6 = arith.addf %3, %5 : vector<8x96xf32>
    %7 = vector.extract_strided_slice %6 {offsets = [0, 0], sizes = [8, 8], strides = [1, 1]} : vector<8x96xf32> to vector<8x8xf32>
    %8 = vector.shape_cast %7 : vector<8x8xf32> to vector<1x8x8xf32>
    %9 = vector.extract_strided_slice %6 {offsets = [0, 32], sizes = [8, 8], strides = [1, 1]} : vector<8x96xf32> to vector<8x8xf32>
    %10 = vector.shape_cast %9 : vector<8x8xf32> to vector<1x8x8xf32>
    %11 = vector.extract_strided_slice %6 {offsets = [0, 64], sizes = [8, 8], strides = [1, 1]} : vector<8x96xf32> to vector<8x8xf32>
    %12 = vector.shape_cast %11 : vector<8x8xf32> to vector<1x8x8xf32>
    "tpu.trace_start"() <{level = 10 : i32, message = "wqd,wkd->wqk"}> : () -> ()
    %cst_6 = arith.constant dense<0.000000e+00> : vector<1x8x8xf32>
    %13 = tpu.matmul %8, %10, %cst_6 {dimension_numbers = #tpu.dot_dimension_numbers<[2], [2], [1], [1], [0, 0, 0, 1, 1, 1], [0], [0]>} : vector<1x8x8xf32>, vector<1x8x8xf32>, vector<1x8x8xf32> -> vector<1x8x8xf32>
    "tpu.trace_stop"() : () -> ()
    %cst_7 = arith.constant dense<0xFF800000> : vector<1x8xf32>
    %14 = vector.multi_reduction <maximumf>, %13, %cst_7 [2] : vector<1x8x8xf32> to vector<1x8xf32>
    %15 = vector.shape_cast %14 : vector<1x8xf32> to vector<1x8x1xf32>
    %16 = vector.broadcast %15 : vector<1x8x1xf32> to vector<1x8x8xf32>
    %17 = arith.subf %13, %16 : vector<1x8x8xf32>
    %18 = math.exp %17 : vector<1x8x8xf32>
    %cst_8 = arith.constant dense<0.000000e+00> : vector<1x8xf32>
    %19 = vector.multi_reduction <add>, %18, %cst_8 [2] : vector<1x8x8xf32> to vector<1x8xf32>
    %20 = vector.shape_cast %19 : vector<1x8xf32> to vector<1x8x1xf32>
    %21 = tpu.reciprocal %20 {approx = true} : vector<1x8x1xf32> -> vector<1x8x1xf32>
    %22 = vector.broadcast %21 : vector<1x8x1xf32> to vector<1x8x8xf32>
    %23 = arith.mulf %18, %22 : vector<1x8x8xf32>
    "tpu.trace_start"() <{level = 10 : i32, message = "wqk,wkd->wqd"}> : () -> ()
    %cst_9 = arith.constant dense<0.000000e+00> : vector<1x8x8xf32>
    %24 = tpu.matmul %23, %12, %cst_9 {dimension_numbers = #tpu.dot_dimension_numbers<[2], [1], [1], [2], [0, 0, 0, 1, 1, 2], [0], [0]>} : vector<1x8x8xf32>, vector<1x8x8xf32>, vector<1x8x8xf32> -> vector<1x8x8xf32>
    "tpu.trace_stop"() : () -> ()
    %25 = vector.shape_cast %24 : vector<1x8x8xf32> to vector<8x8xf32>
    %26 = vector.extract_strided_slice %6 {offsets = [0, 8], sizes = [8, 8], strides = [1, 1]} : vector<8x96xf32> to vector<8x8xf32>
    %27 = vector.shape_cast %26 : vector<8x8xf32> to vector<1x8x8xf32>
    %28 = vector.extract_strided_slice %6 {offsets = [0, 40], sizes = [8, 8], strides = [1, 1]} : vector<8x96xf32> to vector<8x8xf32>
    %29 = vector.shape_cast %28 : vector<8x8xf32> to vector<1x8x8xf32>
    %30 = vector.extract_strided_slice %6 {offsets = [0, 72], sizes = [8, 8], strides = [1, 1]} : vector<8x96xf32> to vector<8x8xf32>
    %31 = vector.shape_cast %30 : vector<8x8xf32> to vector<1x8x8xf32>
    "tpu.trace_start"() <{level = 10 : i32, message = "wqd,wkd->wqk"}> : () -> ()
    %cst_10 = arith.constant dense<0.000000e+00> : vector<1x8x8xf32>
    %32 = tpu.matmul %27, %29, %cst_10 {dimension_numbers = #tpu.dot_dimension_numbers<[2], [2], [1], [1], [0, 0, 0, 1, 1, 1], [0], [0]>} : vector<1x8x8xf32>, vector<1x8x8xf32>, vector<1x8x8xf32> -> vector<1x8x8xf32>
    "tpu.trace_stop"() : () -> ()
    %cst_11 = arith.constant dense<0xFF800000> : vector<1x8xf32>
    %33 = vector.multi_reduction <maximumf>, %32, %cst_11 [2] : vector<1x8x8xf32> to vector<1x8xf32>
    %34 = vector.shape_cast %33 : vector<1x8xf32> to vector<1x8x1xf32>
    %35 = vector.broadcast %34 : vector<1x8x1xf32> to vector<1x8x8xf32>
    %36 = arith.subf %32, %35 : vector<1x8x8xf32>
    %37 = math.exp %36 : vector<1x8x8xf32>
    %cst_12 = arith.constant dense<0.000000e+00> : vector<1x8xf32>
    %38 = vector.multi_reduction <add>, %37, %cst_12 [2] : vector<1x8x8xf32> to vector<1x8xf32>
    %39 = vector.shape_cast %38 : vector<1x8xf32> to vector<1x8x1xf32>
    %40 = tpu.reciprocal %39 {approx = true} : vector<1x8x1xf32> -> vector<1x8x1xf32>
    %41 = vector.broadcast %40 : vector<1x8x1xf32> to vector<1x8x8xf32>
    %42 = arith.mulf %37, %41 : vector<1x8x8xf32>
    "tpu.trace_start"() <{level = 10 : i32, message = "wqk,wkd->wqd"}> : () -> ()
    %cst_13 = arith.constant dense<0.000000e+00> : vector<1x8x8xf32>
    %43 = tpu.matmul %42, %31, %cst_13 {dimension_numbers = #tpu.dot_dimension_numbers<[2], [1], [1], [2], [0, 0, 0, 1, 1, 2], [0], [0]>} : vector<1x8x8xf32>, vector<1x8x8xf32>, vector<1x8x8xf32> -> vector<1x8x8xf32>
    "tpu.trace_stop"() : () -> ()
    %44 = vector.shape_cast %43 : vector<1x8x8xf32> to vector<8x8xf32>
    %45 = vector.extract_strided_slice %6 {offsets = [0, 16], sizes = [8, 8], strides = [1, 1]} : vector<8x96xf32> to vector<8x8xf32>
    %46 = vector.shape_cast %45 : vector<8x8xf32> to vector<1x8x8xf32>
    %47 = vector.extract_strided_slice %6 {offsets = [0, 48], sizes = [8, 8], strides = [1, 1]} : vector<8x96xf32> to vector<8x8xf32>
    %48 = vector.shape_cast %47 : vector<8x8xf32> to vector<1x8x8xf32>
    %49 = vector.extract_strided_slice %6 {offsets = [0, 80], sizes = [8, 8], strides = [1, 1]} : vector<8x96xf32> to vector<8x8xf32>
    %50 = vector.shape_cast %49 : vector<8x8xf32> to vector<1x8x8xf32>
    "tpu.trace_start"() <{level = 10 : i32, message = "wqd,wkd->wqk"}> : () -> ()
    %cst_14 = arith.constant dense<0.000000e+00> : vector<1x8x8xf32>
    %51 = tpu.matmul %46, %48, %cst_14 {dimension_numbers = #tpu.dot_dimension_numbers<[2], [2], [1], [1], [0, 0, 0, 1, 1, 1], [0], [0]>} : vector<1x8x8xf32>, vector<1x8x8xf32>, vector<1x8x8xf32> -> vector<1x8x8xf32>
    "tpu.trace_stop"() : () -> ()
    %cst_15 = arith.constant dense<0xFF800000> : vector<1x8xf32>
    %52 = vector.multi_reduction <maximumf>, %51, %cst_15 [2] : vector<1x8x8xf32> to vector<1x8xf32>
    %53 = vector.shape_cast %52 : vector<1x8xf32> to vector<1x8x1xf32>
    %54 = vector.broadcast %53 : vector<1x8x1xf32> to vector<1x8x8xf32>
    %55 = arith.subf %51, %54 : vector<1x8x8xf32>
    %56 = math.exp %55 : vector<1x8x8xf32>
    %cst_16 = arith.constant dense<0.000000e+00> : vector<1x8xf32>
    %57 = vector.multi_reduction <add>, %56, %cst_16 [2] : vector<1x8x8xf32> to vector<1x8xf32>
    %58 = vector.shape_cast %57 : vector<1x8xf32> to vector<1x8x1xf32>
    %59 = tpu.reciprocal %58 {approx = true} : vector<1x8x1xf32> -> vector<1x8x1xf32>
    %60 = vector.broadcast %59 : vector<1x8x1xf32> to vector<1x8x8xf32>
    %61 = arith.mulf %56, %60 : vector<1x8x8xf32>
    "tpu.trace_start"() <{level = 10 : i32, message = "wqk,wkd->wqd"}> : () -> ()
    %cst_17 = arith.constant dense<0.000000e+00> : vector<1x8x8xf32>
    %62 = tpu.matmul %61, %50, %cst_17 {dimension_numbers = #tpu.dot_dimension_numbers<[2], [1], [1], [2], [0, 0, 0, 1, 1, 2], [0], [0]>} : vector<1x8x8xf32>, vector<1x8x8xf32>, vector<1x8x8xf32> -> vector<1x8x8xf32>
    "tpu.trace_stop"() : () -> ()
    %63 = vector.shape_cast %62 : vector<1x8x8xf32> to vector<8x8xf32>
    %64 = vector.extract_strided_slice %6 {offsets = [0, 24], sizes = [8, 8], strides = [1, 1]} : vector<8x96xf32> to vector<8x8xf32>
    %65 = vector.shape_cast %64 : vector<8x8xf32> to vector<1x8x8xf32>
    %66 = vector.extract_strided_slice %6 {offsets = [0, 56], sizes = [8, 8], strides = [1, 1]} : vector<8x96xf32> to vector<8x8xf32>
    %67 = vector.shape_cast %66 : vector<8x8xf32> to vector<1x8x8xf32>
    %68 = vector.extract_strided_slice %6 {offsets = [0, 88], sizes = [8, 8], strides = [1, 1]} : vector<8x96xf32> to vector<8x8xf32>
    %69 = vector.shape_cast %68 : vector<8x8xf32> to vector<1x8x8xf32>
    "tpu.trace_start"() <{level = 10 : i32, message = "wqd,wkd->wqk"}> : () -> ()
    %cst_18 = arith.constant dense<0.000000e+00> : vector<1x8x8xf32>
    %70 = tpu.matmul %65, %67, %cst_18 {dimension_numbers = #tpu.dot_dimension_numbers<[2], [2], [1], [1], [0, 0, 0, 1, 1, 1], [0], [0]>} : vector<1x8x8xf32>, vector<1x8x8xf32>, vector<1x8x8xf32> -> vector<1x8x8xf32>
    "tpu.trace_stop"() : () -> ()
    %cst_19 = arith.constant dense<0xFF800000> : vector<1x8xf32>
    %71 = vector.multi_reduction <maximumf>, %70, %cst_19 [2] : vector<1x8x8xf32> to vector<1x8xf32>
    %72 = vector.shape_cast %71 : vector<1x8xf32> to vector<1x8x1xf32>
    %73 = vector.broadcast %72 : vector<1x8x1xf32> to vector<1x8x8xf32>
    %74 = arith.subf %70, %73 : vector<1x8x8xf32>
    %75 = math.exp %74 : vector<1x8x8xf32>
    %cst_20 = arith.constant dense<0.000000e+00> : vector<1x8xf32>
    %76 = vector.multi_reduction <add>, %75, %cst_20 [2] : vector<1x8x8xf32> to vector<1x8xf32>
    %77 = vector.shape_cast %76 : vector<1x8xf32> to vector<1x8x1xf32>
    %78 = tpu.reciprocal %77 {approx = true} : vector<1x8x1xf32> -> vector<1x8x1xf32>
    %79 = vector.broadcast %78 : vector<1x8x1xf32> to vector<1x8x8xf32>
    %80 = arith.mulf %75, %79 : vector<1x8x8xf32>
    "tpu.trace_start"() <{level = 10 : i32, message = "wqk,wkd->wqd"}> : () -> ()
    %cst_21 = arith.constant dense<0.000000e+00> : vector<1x8x8xf32>
    %81 = tpu.matmul %80, %69, %cst_21 {dimension_numbers = #tpu.dot_dimension_numbers<[2], [1], [1], [2], [0, 0, 0, 1, 1, 2], [0], [0]>} : vector<1x8x8xf32>, vector<1x8x8xf32>, vector<1x8x8xf32> -> vector<1x8x8xf32>
    "tpu.trace_stop"() : () -> ()
    %82 = vector.shape_cast %81 : vector<1x8x8xf32> to vector<8x8xf32>
    %83 = tpu.concatenate %25, %44, %63, %82 in 1 : vector<8x8xf32>, vector<8x8xf32>, vector<8x8xf32>, vector<8x8xf32> -> vector<8x32xf32>
    %c0_22 = arith.constant 0 : index
    %c0_23 = arith.constant 0 : index
    %84 = vector.load %arg5[%c0_22, %c0_23] : memref<32x32xf32, #tpu.memory_space<vmem>>, vector<32x32xf32>
    %cst_24 = arith.constant dense<0.000000e+00> : vector<8x32xf32>
    %85 = tpu.matmul %83, %84, %cst_24 {dimension_numbers = #tpu.dot_dimension_numbers<[1], [0], [0], [1], [0, 0, 1, 1], [], []>} : vector<8x32xf32>, vector<32x32xf32>, vector<8x32xf32> -> vector<8x32xf32>
    %c0_25 = arith.constant 0 : index
    %c0_26 = arith.constant 0 : index
    %86 = vector.load %arg6[%c0_25, %c0_26] : memref<1x32xf32, #tpu.memory_space<vmem>>, vector<1x32xf32>
    %87 = vector.broadcast %86 : vector<1x32xf32> to vector<8x32xf32>
    %88 = arith.addf %85, %87 : vector<8x32xf32>
    %c0_27 = arith.constant 0 : index
    %c0_28 = arith.constant 0 : index
    %c0_29 = arith.constant 0 : index
    %89 = vector.load %arg7[%c0_27, %c0_28, %c0_29] : memref<1x8x32xf32, #tpu.memory_space<vmem>>, vector<1x8x32xf32>
    %90 = vector.shape_cast %89 : vector<1x8x32xf32> to vector<8x32xf32>
    %91 = vector.shape_cast %88 : vector<8x32xf32> to vector<1x8x32xf32>
    tpu.vector_store %arg7[%c0_27, %c0_28, %c0_29], %91 {strides = array<i32>} : memref<1x8x32xf32, #tpu.memory_space<vmem>>, vector<1x8x32xf32>,
    return
  }
  func.func @transform_0(%arg0: i32, %arg1: i32) -> (i32, i32, i32) {
    %c0_i32 = arith.constant 0 : i32
    %c0_i32_0 = arith.constant 0 : i32
    return %arg0, %arg1, %c0_i32 : i32, i32, i32
  }
  func.func @transform_1(%arg0: i32, %arg1: i32) -> (i32, i32) {
    %c0_i32 = arith.constant 0 : i32
    %c0_i32_0 = arith.constant 0 : i32
    %c0_i32_1 = arith.constant 0 : i32
    return %c0_i32, %c0_i32_0 : i32, i32
  }
  func.func @transform_2(%arg0: i32, %arg1: i32) -> (i32, i32) {
    %c0_i32 = arith.constant 0 : i32
    %c0_i32_0 = arith.constant 0 : i32
    %c0_i32_1 = arith.constant 0 : i32
    return %c0_i32, %c0_i32_0 : i32, i32
  }
  func.func @transform_3(%arg0: i32, %arg1: i32) -> (i32, i32) {
    %c0_i32 = arith.constant 0 : i32
    %c0_i32_0 = arith.constant 0 : i32
    %c0_i32_1 = arith.constant 0 : i32
    return %c0_i32, %c0_i32_0 : i32, i32
  }
  func.func @transform_4(%arg0: i32, %arg1: i32) -> (i32, i32) {
    %c0_i32 = arith.constant 0 : i32
    %c0_i32_0 = arith.constant 0 : i32
    %c0_i32_1 = arith.constant 0 : i32
    return %c0_i32, %c0_i32_0 : i32, i32
  }
  func.func @transform_5(%arg0: i32, %arg1: i32) -> (i32, i32, i32) {
    %c0_i32 = arith.constant 0 : i32
    %c0_i32_0 = arith.constant 0 : i32
    return %arg0, %arg1, %c0_i32 : i32, i32, i32
  }
}

</mosaic_0001>

<llo_original>
// kernel: tpu_custom_call.1
$region0: #{tpu_custom_call.1}
  #allocation0 [shape = 'u32[]', space=smem, size = 0x4, offset = 0x4, fixed_abs, tag = 'smem constant byte address 0x4 - core index']
  #allocation1 [shape = 'u32[144,128]{1,0:T(1,128)}', space=vmem, size = 0x12000, scoped, tag = 'internal scratch']
  %s0 = inlined_call_operand.hbm [shape: f32[2,16,32], index: 0, kind: input, shape index: {}]
  %s1 = inlined_call_operand.hbm [shape: f32[32,96], index: 1, kind: input, shape index: {}]
  %s2 = inlined_call_operand.vmem [shape: f32[1,96], index: 2, kind: input, shape index: {}]
  %s3 = inlined_call_operand.hbm [shape: f32[32,32], index: 3, kind: input, shape index: {}]
  %s4 = inlined_call_operand.vmem [shape: f32[1,32], index: 4, kind: input, shape index: {}]
  %s5 = inlined_call_operand.hbm [shape: f32[2,16,32], index: 5, kind: output, shape index: {}]
  %s6 = sld [smem:[#allocation0]]
  $region65: #{tpu_custom_call.1} parent=0
    _
  %s8 = ssub.s32 1, %s6
  %s9 = scalar_select 0, %s8, %s6
  $region1: #{tpu_custom_call.1} parent=0
    #allocation2 [shape = 'u8[8192]{0}', space=vmem, size = 0x2000, scoped, tag = 'input window, operand 0']
    #allocation3 [shape = 's32[2]{0}', space=sflag, size = 0x8, scoped, tag = 'scoped memory for tpu_custom_call.1']
    #allocation4 [shape = 's32[2]{0}', space=sflag, size = 0x8, scoped, tag = 'scoped memory for tpu_custom_call.1']
    #allocation5 [shape = 'u8[16384]{0}', space=vmem, size = 0x4000, scoped, tag = 'input window, operand 1, single buffered']
    #allocation6 [shape = 's32[1]{0}', space=sflag, size = 0x4, scoped, tag = 'scoped memory for tpu_custom_call.1']
    #allocation7 [shape = 'u8[16384]{0}', space=vmem, size = 0x4000, scoped, tag = 'input window, operand 3, single buffered']
    #allocation8 [shape = 'u8[8192]{0}', space=vmem, size = 0x2000, scoped, tag = 'output window, operand 0']
    %10 = vsyncpa [#allocation3], 0
    %s11 = scalar_lea.sflag [#allocation3], 1
    %12 = vsyncpa %s11, 0
    %13 = vsyncpa [#allocation6], 0
    %14 = vsyncpa [#allocation4], 0
    %s15 = scalar_lea.sflag [#allocation4], 1
    %16 = vsyncpa %s15, 0
    loop: start=0, step=1, limit=6
    $region2: #{tpu_custom_call.1} parent=1 // loop_pre_header
      _
    $region3: #{tpu_custom_call.1} parent=1 // loop_header
      %s18 = sphi 0, %s22
      %p19 = scmp.ge.s32.totalorder %s18, 6
      %s25 = sphi 0, %s37
      %s26 = sphi 0, %s33
      %s27 = sphi 0, %s25
      %s28 = sphi 0, %s26
      %s29 = sphi 0, %s27
      %s30 = sphi 0, %s28
      %s42 = sphi 0, %s44
      %s45 = sphi 0, %s42
      %s46 = sphi 0, %s45
      %s62 = sphi 0, %s46
      %s66 = sphi 0, %s66
      %s68 = sphi 0, %s66
      %s69 = sphi 0, %s68
      %s83 = sphi 0, %s69
      %s87 = sphi 0, %s87
      %s89 = sphi 0, %s87
      %s90 = sphi 0, %s89
      %s104 = sphi 0, %s90
      %s108 = sphi 0, %s108
      %s110 = sphi 0, %s108
      %s111 = sphi 0, %s110
      %s125 = sphi 0, %s111
      %s129 = sphi 0, %s129
      %s131 = sphi 0, %s129
      %s132 = sphi 0, %s131
      %s146 = sphi 0, %s132
      %s154 = sphi 0, %s156
      %s157 = sphi 0, %s154
      %s158 = sphi 0, %s157
      %s174 = sphi 0, %s158
    $region4: #{tpu_custom_call.1} parent=1 // loop_header_branch
      %21 = sbr.rel (%p19) target = $region8
    $region5: #{tpu_custom_call.1} parent=1 // loop_body
      %s23 = ssub.s32 %s18, 1
      %s24 = ssub.s32 %s18, 2
      %s31 = sadd.s32 1, %s26
      %p32 = scmp.ge.s32.totalorder %s31, 2
      %s33 = scalar_select %p32, 0, %s31
      %s34 = sadd.s32 1, %s25
      %s35 = scalar_select %p32, %s34, %s25
      %p36 = scmp.ge.s32.totalorder %s35, 2
      %s37 = scalar_select %p36, 0, %s35
      %s38 = ssub.s32 %s25, %s37
      %s39 = ssub.s32 %s26, %s33
      %s40 = sor.u32 %s38, %s39
      %p41 = scmp.eq.s32.totalorder %s40, 0
      %s43 = sadd.s32 %s42, 1
      %s44 = scalar_select %p41, %s42, %s43
      %p47 = pneg %p41
      %p48 = scmp.eq.s32.totalorder %s18, 3
      %p49 = por %p47, %p48
      %p50 = scmp.ne.s32.totalorder %s42, %s45
      %p51 = scmp.eq.s32.totalorder %s18, 0
      %p52 = por %p50, %p51
      %p53 = scmp.ne.s32.totalorder %s42, %s45
      %p54 = scmp.eq.s32.totalorder %s23, 3
      %p55 = por %p53, %p54
      %p56 = scmp.ne.s32.totalorder %s45, %s46
      %p57 = scmp.eq.s32.totalorder %s23, 0
      %p58 = por %p56, %p57
      %p59 = scmp.ne.s32.totalorder %s45, %s46
      %p60 = scmp.eq.s32.totalorder %s24, 3
      %p61 = por %p59, %p60
      %p63 = scmp.ne.s32.totalorder %s46, %s62
      %p64 = scmp.eq.s32.totalorder %s24, 0
      %p65 = por %p63, %p64
      %s67 = sadd.s32 %s66, 1
      %p70 = scmp.eq.s32.totalorder %s18, 3
      %p71 = scmp.ne.s32.totalorder %s66, %s68
      %p72 = scmp.eq.s32.totalorder %s18, 0
      %p73 = por %p71, %p72
      %p74 = scmp.ne.s32.totalorder %s66, %s68
      %p75 = scmp.eq.s32.totalorder %s23, 3
      %p76 = por %p74, %p75
      %p77 = scmp.ne.s32.totalorder %s68, %s69
      %p78 = scmp.eq.s32.totalorder %s23, 0
      %p79 = por %p77, %p78
      %p80 = scmp.ne.s32.totalorder %s68, %s69
      %p81 = scmp.eq.s32.totalorder %s24, 3
      %p82 = por %p80, %p81
      %p84 = scmp.ne.s32.totalorder %s69, %s83
      %p85 = scmp.eq.s32.totalorder %s24, 0
      %p86 = por %p84, %p85
      %s88 = sadd.s32 %s87, 1
      %p91 = scmp.eq.s32.totalorder %s18, 3
      %p92 = scmp.ne.s32.totalorder %s87, %s89
      %p93 = scmp.eq.s32.totalorder %s18, 0
      %p94 = por %p92, %p93
      %p95 = scmp.ne.s32.totalorder %s87, %s89
      %p96 = scmp.eq.s32.totalorder %s23, 3
      %p97 = por %p95, %p96
      %p98 = scmp.ne.s32.totalorder %s89, %s90
      %p99 = scmp.eq.s32.totalorder %s23, 0
      %p100 = por %p98, %p99
      %p101 = scmp.ne.s32.totalorder %s89, %s90
      %p102 = scmp.eq.s32.totalorder %s24, 3
      %p103 = por %p101, %p102
      %p105 = scmp.ne.s32.totalorder %s90, %s104
      %p106 = scmp.eq.s32.totalorder %s24, 0
      %p107 = por %p105, %p106
      %s109 = sadd.s32 %s108, 1
      %p112 = scmp.eq.s32.totalorder %s18, 3
      %p113 = scmp.ne.s32.totalorder %s108, %s110
      %p114 = scmp.eq.s32.totalorder %s18, 0
      %p115 = por %p113, %p114
      %p116 = scmp.ne.s32.totalorder %s108, %s110
      %p117 = scmp.eq.s32.totalorder %s23, 3
      %p118 = por %p116, %p117
      %p119 = scmp.ne.s32.totalorder %s110, %s111
      %p120 = scmp.eq.s32.totalorder %s23, 0
      %p121 = por %p119, %p120
      %p122 = scmp.ne.s32.totalorder %s110, %s111
      %p123 = scmp.eq.s32.totalorder %s24, 3
      %p124 = por %p122, %p123
      %p126 = scmp.ne.s32.totalorder %s111, %s125
      %p127 = scmp.eq.s32.totalorder %s24, 0
      %p128 = por %p126, %p127
      %s130 = sadd.s32 %s129, 1
      %p133 = scmp.eq.s32.totalorder %s18, 3
      %p134 = scmp.ne.s32.totalorder %s129, %s131
      %p135 = scmp.eq.s32.totalorder %s18, 0
      %p136 = por %p134, %p135
      %p137 = scmp.ne.s32.totalorder %s129, %s131
      %p138 = scmp.eq.s32.totalorder %s23, 3
      %p139 = por %p137, %p138
      %p140 = scmp.ne.s32.totalorder %s131, %s132
      %p141 = scmp.eq.s32.totalorder %s23, 0
      %p142 = por %p140, %p141
      %p143 = scmp.ne.s32.totalorder %s131, %s132
      %p144 = scmp.eq.s32.totalorder %s24, 3
      %p145 = por %p143, %p144
      %p147 = scmp.ne.s32.totalorder %s132, %s146
      %p148 = scmp.eq.s32.totalorder %s24, 0
      %p149 = por %p147, %p148
      %s150 = ssub.s32 %s25, %s37
      %s151 = ssub.s32 %s26, %s33
      %s152 = sor.u32 %s150, %s151
      %p153 = scmp.eq.s32.totalorder %s152, 0
      %s155 = sadd.s32 %s154, 1
      %s156 = scalar_select %p153, %s154, %s155
      %p159 = pneg %p153
      %p160 = scmp.eq.s32.totalorder %s18, 3
      %p161 = por %p159, %p160
      %p162 = scmp.ne.s32.totalorder %s154, %s157
      %p163 = scmp.eq.s32.totalorder %s18, 0
      %p164 = por %p162, %p163
      %p165 = scmp.ne.s32.totalorder %s154, %s157
      %p166 = scmp.eq.s32.totalorder %s23, 3
      %p167 = por %p165, %p166
      %p168 = scmp.ne.s32.totalorder %s157, %s158
      %p169 = scmp.eq.s32.totalorder %s23, 0
      %p170 = por %p168, %p169
      %p171 = scmp.ne.s32.totalorder %s157, %s158
      %p172 = scmp.eq.s32.totalorder %s24, 3
      %p173 = por %p171, %p172
      %p175 = scmp.ne.s32.totalorder %s158, %s174
      %p176 = scmp.eq.s32.totalorder %s24, 0
      %p177 = por %p175, %p176
      %p178 = scmp.le.s32.totalorder 1, %s18
      %p179 = scmp.lt.s32.totalorder %s18, 5
      %p180 = pnand %p178, %p179
      %p181 = pneg %p180
      // Predicated region
      $region9: #{tpu_custom_call.1} parent=5 // pred_check
        _
      $region10: #{tpu_custom_call.1} parent=5 // pred_check_branch
        %183 = sbr.rel (%p180) target = $region12
      $region11: #{tpu_custom_call.1} parent=5 // pred_region
        %s184 = ssub.s32 %s18, 1
        // Predicated region
        $region13: #{tpu_custom_call.1} parent=11 // pred_check
          %p185 = pneg %p79
        $region14: #{tpu_custom_call.1} parent=11 // pred_check_branch
          %187 = sbr.rel (%p185) target = $region16
        $region15: #{tpu_custom_call.1} parent=11 // pred_region
          %s189 = ssub.s32 512, 512
          %190 = vsyncadd [#allocation6], %s189
          %s191 = sshll.u32 [#allocation5], 4
          %s192 = int_to_ptr.vmem [resolvable:$true] %s191
          %197 = dma.hbm_to_vmem [thread:$0]  %s1, 512, %s192, [#allocation6], 128, 128, 8
        $region16: #{tpu_custom_call.1} parent=11 // pred_fallthru
          _
        // Predicated region
        $region17: #{tpu_custom_call.1} parent=11 // pred_check
          %p198 = pneg %p100
        $region18: #{tpu_custom_call.1} parent=11 // pred_check_branch
          %200 = sbr.rel (%p198) target = $region20
        $region19: #{tpu_custom_call.1} parent=11 // pred_region
          _
        $region20: #{tpu_custom_call.1} parent=11 // pred_fallthru
          _
        // Predicated region
        $region21: #{tpu_custom_call.1} parent=11 // pred_check
          %p201 = pneg %p121
        $region22: #{tpu_custom_call.1} parent=11 // pred_check_branch
          %203 = sbr.rel (%p201) target = $region24
        $region23: #{tpu_custom_call.1} parent=11 // pred_region
          %s205 = ssub.s32 512, 512
          %206 = vsyncadd [#allocation6], %s205
          %s207 = sshll.u32 [#allocation7], 4
          %s208 = int_to_ptr.vmem [resolvable:$true] %s207
          %213 = dma.hbm_to_vmem [thread:$0]  %s3, 512, %s208, [#allocation6], 128, 128, 8
        $region24: #{tpu_custom_call.1} parent=11 // pred_fallthru
          _
        // Predicated region
        $region25: #{tpu_custom_call.1} parent=11 // pred_check
          %p214 = pneg %p142
        $region26: #{tpu_custom_call.1} parent=11 // pred_check_branch
          %216 = sbr.rel (%p214) target = $region28
        $region27: #{tpu_custom_call.1} parent=11 // pred_region
          _
        $region28: #{tpu_custom_call.1} parent=11 // pred_fallthru
          _
      $region12: #{tpu_custom_call.1} parent=5 // pred_fallthru
        _
      %p217 = scmp.lt.s32.totalorder %s18, 4
      // Predicated region
      $region29: #{tpu_custom_call.1} parent=5 // pred_check
        %p218 = pneg %p217
      $region30: #{tpu_custom_call.1} parent=5 // pred_check_branch
        %220 = sbr.rel (%p218) target = $region32
      $region31: #{tpu_custom_call.1} parent=5 // pred_region
        // Predicated region
        $region33: #{tpu_custom_call.1} parent=31 // pred_check
          %p221 = pneg %p52
        $region34: #{tpu_custom_call.1} parent=31 // pred_check_branch
          %223 = sbr.rel (%p221) target = $region36
        $region35: #{tpu_custom_call.1} parent=31 // pred_region
          %s224 = sand.u32 %s42, 1
          %s225 = scalar_lea.sflag [#allocation3], %s224
          %s226 = sand.u32 %s42, 1
          %s227 = smul.addr %s226, 8
          %s228 = scalar_lea.vmem [#allocation2], %s227
          %s230 = ssub.s32 128, 128
          %231 = vsyncadd %s225, %s230
          %s232 = smul.addr %s25, 2
          %s233 = sadd.s32 %s26, %s232
          %s234 = smul.addr %s233, 128
          %s235 = scalar_lea.hbm %s0, %s234
          %s237 = sshll.u32 %s228, 4
          %s238 = int_to_ptr.vmem [resolvable:$true] %s237
          %240 = dma.hbm_to_vmem [thread:$0]  %s235, 128, %s238, %s225
        $region36: #{tpu_custom_call.1} parent=31 // pred_fallthru
          _
      $region32: #{tpu_custom_call.1} parent=5 // pred_fallthru
        _
      %p241 = scmp.le.s32.totalorder 1, %s18
      %p242 = scmp.lt.s32.totalorder %s18, 5
      %p243 = pnand %p241, %p242
      %p244 = pneg %p243
      // Predicated region
      $region37: #{tpu_custom_call.1} parent=5 // pred_check
        _
      $region38: #{tpu_custom_call.1} parent=5 // pred_check_branch
        %246 = sbr.rel (%p243) target = $region40
      $region39: #{tpu_custom_call.1} parent=5 // pred_region
        %s247 = ssub.s32 %s18, 1
        %s248 = sand.u32 %s45, 1
        %s249 = scalar_lea.sflag [#allocation3], %s248
        %s250 = sand.u32 %s45, 1
        %s251 = smul.addr %s250, 8
        %s252 = scalar_lea.vmem [#allocation2], %s251
        // Predicated region
        $region41: #{tpu_custom_call.1} parent=39 // pred_check
          %p253 = pneg %p58
        $region42: #{tpu_custom_call.1} parent=39 // pred_check_branch
          %255 = sbr.rel (%p253) target = $region44
        $region43: #{tpu_custom_call.1} parent=39 // pred_region
          %256 = dma.done %s249, 128
        $region44: #{tpu_custom_call.1} parent=39 // pred_fallthru
          _
        // Predicated region
        $region45: #{tpu_custom_call.1} parent=39 // pred_check
          %p257 = pneg %p79
        $region46: #{tpu_custom_call.1} parent=39 // pred_check_branch
          %259 = sbr.rel (%p257) target = $region48
        $region47: #{tpu_custom_call.1} parent=39 // pred_region
          %260 = dma.done [#allocation6], 512
        $region48: #{tpu_custom_call.1} parent=39 // pred_fallthru
          _
        // Predicated region
        $region49: #{tpu_custom_call.1} parent=39 // pred_check
          %p261 = pneg %p121
        $region50: #{tpu_custom_call.1} parent=39 // pred_check_branch
          %263 = sbr.rel (%p261) target = $region52
        $region51: #{tpu_custom_call.1} parent=39 // pred_region
          %264 = dma.done [#allocation6], 512
        $region52: #{tpu_custom_call.1} parent=39 // pred_fallthru
          _
        %s265 = sand.u32 %s45, 1
        %s266 = scalar_lea.sflag [#allocation3], %s265
        %s267 = sand.u32 %s45, 1
        %s268 = smul.addr %s267, 8
        %s269 = scalar_lea.vmem [#allocation2], %s268
        %p270 = pneg %p58
        %p271 = pneg %p55
        %p272 = pneg %p79
        %p273 = pneg %p76
        %p274 = pneg %p100
        %p275 = pneg %p97
        %p276 = pneg %p121
        %p277 = pneg %p118
        %p278 = pneg %p142
        %p279 = pneg %p139
        %p280 = pneg %p170
        %p281 = pneg %p167
        %s282 = sand.u32 %s157, 1
        %s283 = scalar_lea.sflag [#allocation4], %s282
        %s284 = sand.u32 %s157, 1
        %s285 = smul.addr %s284, 8
        %s286 = scalar_lea.vmem [#allocation8], %s285
        %v287 = vld [vmem:[%s252] sm:$0xff]
        %v288 = vld [vmem:[#allocation5] sm:$0xff]
        %v289 = vld [vmem:[#allocation5 + $0x8] sm:$0xff]
        %v290 = vld [vmem:[#allocation5 + $0x10] sm:$0xff]
        %v291 = vld [vmem:[#allocation5 + $0x18] sm:$0xff]
        %v292 = vld [vmem:[%s2] sm:$0x1]
        %v294 = vlaneseq
        %v295 = vshrl.u32 %v294, 7
        %v296 = vsub.s32 0, %v295
        %v297 = vrot.slane %v292, %v296
        %vm299 = vcmask 261120
        %v301 = vsel %vm299, %v287, 0
        %303 = vmatprep.subr.mxu0 0.0
        %304 = vmatpush1.msra.mxu0 %v288
        %305 = vmatprep.subr.mxu0 0.0
        %306 = vmatpush1.msra.mxu0 %v289
        %307 = vmatprep.subr.mxu0 0.0
        %308 = vmatpush1.msra.mxu0 %v290
        %309 = vmatprep.subr.mxu0 0.0
        %310 = vmatpush1.msra.mxu0 %v291
        %311 = vmatprep.subr.mxu0 0.0
        %312 = vmatpush1.msra.mxu0 0.0
        %313 = vmatprep.subr.mxu0 0.0
        %314 = vmatpush1.msra.mxu0 0.0
        %315 = vmatprep.subr.mxu0 0.0
        %316 = vmatpush1.msra.mxu0 0.0
        %317 = vmatprep.subr.mxu0 0.0
        %318 = vmatpush1.msra.mxu0 0.0
        %319 = vmatprep.subr.mxu0 0.0
        %320 = vmatpush1.msra.mxu0 0.0
        %321 = vmatprep.subr.mxu0 0.0
        %322 = vmatpush1.msra.mxu0 0.0
        %323 = vmatprep.subr.mxu0 0.0
        %324 = vmatpush1.msra.mxu0 0.0
        %325 = vmatprep.subr.mxu0 0.0
        %326 = vmatpush1.msra.mxu0 0.0
        %327 = vmatprep.subr.mxu0 0.0
        %328 = vmatpush1.msra.mxu0 0.0
        %329 = vmatprep.subr.mxu0 0.0
        %330 = vmatpush1.msra.mxu0 0.0
        %331 = vmatprep.subr.mxu0 0.0
        %332 = vmatpush1.msra.mxu0 0.0
        %333 = vmatprep.subr.mxu0 0.0
        %334 = vmatpush1.msra.mxu0 0.0
        %335 = vmatprep.subr.mxu0 0.0
        %336 = vmatpush1.msra.mxu0 0.0
        %337 = vmatprep.subr.mxu0 0.0
        %338 = vmatpush1.msra.mxu0 0.0
        %339 = vmatprep.subr.mxu0 0.0
        %340 = vmatpush1.msra.mxu0 0.0
        %341 = vmatprep.subr.mxu0 0.0
        %342 = vmatpush1.msra.mxu0 0.0
        %343 = vmatprep.subr.mxu0 0.0
        %344 = vmatpush1.msra.mxu0 0.0
        %345 = vmatprep.subr.mxu0 0.0
        %346 = vmatpush1.msra.mxu0 0.0
        %347 = vmatprep.subr.mxu0 0.0
        %348 = vmatpush1.msra.mxu0 0.0
        %349 = vmatprep.subr.mxu0 0.0
        %350 = vmatpush1.msra.mxu0 0.0
        %351 = vmatprep.subr.mxu0 0.0
        %352 = vmatpush1.msra.mxu0 0.0
        %353 = vmatprep.subr.mxu0 0.0
        %354 = vmatpush1.msra.mxu0 0.0
        %355 = vmatprep.subr.mxu0 0.0
        %356 = vmatpush1.msra.mxu0 0.0
        %357 = vmatprep.subr.mxu0 0.0
        %358 = vmatpush1.msra.mxu0 0.0
        %359 = vmatprep.subr.mxu0 0.0
        %360 = vmatpush1.msra.mxu0 0.0
        %361 = vmatprep.subr.mxu0 0.0
        %362 = vmatpush1.msra.mxu0 0.0
        %363 = vmatprep.subr.mxu0 0.0
        %364 = vmatpush1.msra.mxu0 0.0
        %365 = vmatprep.subr.mxu0 0.0
        %366 = vmatpush1.msra.mxu0 0.0
        %367 = vmatprep.mubr.f32.mxu0 0.0
        %368 = vmatmul.mubr.f32.gmra.mrb[0].mxu0 %v301
        %v369 = vpop.f32.mrb[0].mxu0
        %v370 = vadd.f32 %v297, %v369
        %v371 = vpop.f32.mrb[0].mxu0
        %372 = vdwg.mxu0
        %374 = vrot.lane.b32.xlu0 %v370, 96
        %v375 = vpop.permute.xlu0 %374
        %vm376 = vcmask 64512
        %v377 = vsel %vm376, %v370, 0
        %v379 = vsel %vm376, %v375, 0
        %381 = vmatprep.subr.mxu0 0.0
        %382 = vmatpush1.xpose.msra.mxu0 %v379
        %383 = vmatprep.subr.mxu0 0.0
        %384 = vmatpush1.xpose.msra.mxu0 0.0
        %385 = vmatprep.subr.mxu0 0.0
        %386 = vmatpush1.xpose.msra.mxu0 0.0
        %387 = vmatprep.subr.mxu0 0.0
        %388 = vmatpush1.xpose.msra.mxu0 0.0
        %389 = vmatprep.subr.mxu0 0.0
        %390 = vmatpush1.xpose.msra.mxu0 0.0
        %391 = vmatprep.subr.mxu0 0.0
        %392 = vmatpush1.xpose.msra.mxu0 0.0
        %393 = vmatprep.subr.mxu0 0.0
        %394 = vmatpush1.xpose.msra.mxu0 0.0
        %395 = vmatprep.subr.mxu0 0.0
        %396 = vmatpush1.xpose.msra.mxu0 0.0
        %397 = vmatprep.subr.mxu0 0.0
        %398 = vmatpush1.xpose.msra.mxu0 0.0
        %399 = vmatprep.subr.mxu0 0.0
        %400 = vmatpush1.xpose.msra.mxu0 0.0
        %401 = vmatprep.subr.mxu0 0.0
        %402 = vmatpush1.xpose.msra.mxu0 0.0
        %403 = vmatprep.subr.mxu0 0.0
        %404 = vmatpush1.xpose.msra.mxu0 0.0
        %405 = vmatprep.subr.mxu0 0.0
        %406 = vmatpush1.xpose.msra.mxu0 0.0
        %407 = vmatprep.subr.mxu0 0.0
        %408 = vmatpush1.xpose.msra.mxu0 0.0
        %409 = vmatprep.subr.mxu0 0.0
        %410 = vmatpush1.xpose.msra.mxu0 0.0
        %411 = vmatprep.subr.mxu0 0.0
        %412 = vmatpush1.xpose.msra.mxu0 0.0
        %413 = vmatprep.subr.mxu0 0.0
        %414 = vmatpush1.xpose.msra.mxu0 0.0
        %415 = vmatprep.subr.mxu0 0.0
        %416 = vmatpush1.xpose.msra.mxu0 0.0
        %417 = vmatprep.subr.mxu0 0.0
        %418 = vmatpush1.xpose.msra.mxu0 0.0
        %419 = vmatprep.subr.mxu0 0.0
        %420 = vmatpush1.xpose.msra.mxu0 0.0
        %421 = vmatprep.subr.mxu0 0.0
        %422 = vmatpush1.xpose.msra.mxu0 0.0
        %423 = vmatprep.subr.mxu0 0.0
        %424 = vmatpush1.xpose.msra.mxu0 0.0
        %425 = vmatprep.subr.mxu0 0.0
        %426 = vmatpush1.xpose.msra.mxu0 0.0
        %427 = vmatprep.subr.mxu0 0.0
        %428 = vmatpush1.xpose.msra.mxu0 0.0
        %429 = vmatprep.subr.mxu0 0.0
        %430 = vmatpush1.xpose.msra.mxu0 0.0
        %431 = vmatprep.subr.mxu0 0.0
        %432 = vmatpush1.xpose.msra.mxu0 0.0
        %433 = vmatprep.subr.mxu0 0.0
        %434 = vmatpush1.xpose.msra.mxu0 0.0
        %435 = vmatprep.subr.mxu0 0.0
        %436 = vmatpush1.xpose.msra.mxu0 0.0
        %437 = vmatprep.subr.mxu0 0.0
        %438 = vmatpush1.xpose.msra.mxu0 0.0
        %439 = vmatprep.subr.mxu0 0.0
        %440 = vmatpush1.xpose.msra.mxu0 0.0
        %441 = vmatprep.subr.mxu0 0.0
        %442 = vmatpush1.xpose.msra.mxu0 0.0
        %443 = vmatprep.subr.mxu0 0.0
        %444 = vmatpush1.xpose.msra.mxu0 0.0
        %445 = vmatprep.mubr.f32.mxu0 0.0
        %446 = vmatmul.mubr.f32.gmra.mrb[0].mxu0 %v377
        %v447 = vpop.f32.mrb[0].mxu0
        %v448 = vadd.f32 0.0, %v447
        %v449 = vpop.f32.mrb[0].mxu0
        %450 = vdwg.mxu0
        %v451 = vsel %vm376, %v448, -inf
        %452 = vmax.xlane.f32.xlu0 %v451
        %v453 = vpop.xlane.xlu0 %452
        %v454 = vsub.f32 %v448, %v453
        %v455 = vmul.f32 %v454, 1.442695
        %v456 = vpow.pop %v455
        %v457 = vsel %vm376, %v456, 0.0
        %458 = vadd.xlane.f32.xlu0 %v457
        %v459 = vpop.xlane.xlu0 %458
        %v460 = vrcp.pop %v459
        %v461 = vmul.f32 %v456, %v460
        %462 = vrot.lane.b32.xlu0 %v370, 64
        %v463 = vpop.permute.xlu0 %462
        %v466 = vsel %vm376, %v461, 0
        %468 = vmatprep.subr.mxu0 0.0
        %469 = vmatpush1.msra.mxu0 %v463
        %470 = vmatprep.subr.mxu0 0.0
        %471 = vmatpush1.msra.mxu0 0.0
        %472 = vmatprep.subr.mxu0 0.0
        %473 = vmatpush1.msra.mxu0 0.0
        %474 = vmatprep.subr.mxu0 0.0
        %475 = vmatpush1.msra.mxu0 0.0
        %476 = vmatprep.subr.mxu0 0.0
        %477 = vmatpush1.msra.mxu0 0.0
        %478 = vmatprep.subr.mxu0 0.0
        %479 = vmatpush1.msra.mxu0 0.0
        %480 = vmatprep.subr.mxu0 0.0
        %481 = vmatpush1.msra.mxu0 0.0
        %482 = vmatprep.subr.mxu0 0.0
        %483 = vmatpush1.msra.mxu0 0.0
        %484 = vmatprep.subr.mxu0 0.0
        %485 = vmatpush1.msra.mxu0 0.0
        %486 = vmatprep.subr.mxu0 0.0
        %487 = vmatpush1.msra.mxu0 0.0
        %488 = vmatprep.subr.mxu0 0.0
        %489 = vmatpush1.msra.mxu0 0.0
        %490 = vmatprep.subr.mxu0 0.0
        %491 = vmatpush1.msra.mxu0 0.0
        %492 = vmatprep.subr.mxu0 0.0
        %493 = vmatpush1.msra.mxu0 0.0
        %494 = vmatprep.subr.mxu0 0.0
        %495 = vmatpush1.msra.mxu0 0.0
        %496 = vmatprep.subr.mxu0 0.0
        %497 = vmatpush1.msra.mxu0 0.0
        %498 = vmatprep.subr.mxu0 0.0
        %499 = vmatpush1.msra.mxu0 0.0
        %500 = vmatprep.subr.mxu0 0.0
        %501 = vmatpush1.msra.mxu0 0.0
        %502 = vmatprep.subr.mxu0 0.0
        %503 = vmatpush1.msra.mxu0 0.0
        %504 = vmatprep.subr.mxu0 0.0
        %505 = vmatpush1.msra.mxu0 0.0
        %506 = vmatprep.subr.mxu0 0.0
        %507 = vmatpush1.msra.mxu0 0.0
        %508 = vmatprep.subr.mxu0 0.0
        %509 = vmatpush1.msra.mxu0 0.0
        %510 = vmatprep.subr.mxu0 0.0
        %511 = vmatpush1.msra.mxu0 0.0
        %512 = vmatprep.subr.mxu0 0.0
        %513 = vmatpush1.msra.mxu0 0.0
        %514 = vmatprep.subr.mxu0 0.0
        %515 = vmatpush1.msra.mxu0 0.0
        %516 = vmatprep.subr.mxu0 0.0
        %517 = vmatpush1.msra.mxu0 0.0
        %518 = vmatprep.subr.mxu0 0.0
        %519 = vmatpush1.msra.mxu0 0.0
        %520 = vmatprep.subr.mxu0 0.0
        %521 = vmatpush1.msra.mxu0 0.0
        %522 = vmatprep.subr.mxu0 0.0
        %523 = vmatpush1.msra.mxu0 0.0
        %524 = vmatprep.subr.mxu0 0.0
        %525 = vmatpush1.msra.mxu0 0.0
        %526 = vmatprep.subr.mxu0 0.0
        %527 = vmatpush1.msra.mxu0 0.0
        %528 = vmatprep.subr.mxu0 0.0
        %529 = vmatpush1.msra.mxu0 0.0
        %530 = vmatprep.subr.mxu0 0.0
        %531 = vmatpush1.msra.mxu0 0.0
        %532 = vmatprep.mubr.f32.mxu0 0.0
        %533 = vmatmul.mubr.f32.gmra.mrb[0].mxu0 %v466
        %v534 = vpop.f32.mrb[0].mxu0
        %v535 = vadd.f32 0.0, %v534
        %v536 = vpop.f32.mrb[0].mxu0
        %537 = vdwg.mxu0
        %538 = vrot.lane.b32.xlu0 %v370, 120
        %v539 = vpop.permute.xlu0 %538
        %540 = vrot.lane.b32.xlu0 %v370, 88
        %v541 = vpop.permute.xlu0 %540
        %v542 = vsel %vm376, %v539, 0
        %v544 = vsel %vm376, %v541, 0
        %546 = vmatprep.subr.mxu0 0.0
        %547 = vmatpush1.xpose.msra.mxu0 %v544
        %548 = vmatprep.subr.mxu0 0.0
        %549 = vmatpush1.xpose.msra.mxu0 0.0
        %550 = vmatprep.subr.mxu0 0.0
        %551 = vmatpush1.xpose.msra.mxu0 0.0
        %552 = vmatprep.subr.mxu0 0.0
        %553 = vmatpush1.xpose.msra.mxu0 0.0
        %554 = vmatprep.subr.mxu0 0.0
        %555 = vmatpush1.xpose.msra.mxu0 0.0
        %556 = vmatprep.subr.mxu0 0.0
        %557 = vmatpush1.xpose.msra.mxu0 0.0
        %558 = vmatprep.subr.mxu0 0.0
        %559 = vmatpush1.xpose.msra.mxu0 0.0
        %560 = vmatprep.subr.mxu0 0.0
        %561 = vmatpush1.xpose.msra.mxu0 0.0
        %562 = vmatprep.subr.mxu0 0.0
        %563 = vmatpush1.xpose.msra.mxu0 0.0
        %564 = vmatprep.subr.mxu0 0.0
        %565 = vmatpush1.xpose.msra.mxu0 0.0
        %566 = vmatprep.subr.mxu0 0.0
        %567 = vmatpush1.xpose.msra.mxu0 0.0
        %568 = vmatprep.subr.mxu0 0.0
        %569 = vmatpush1.xpose.msra.mxu0 0.0
        %570 = vmatprep.subr.mxu0 0.0
        %571 = vmatpush1.xpose.msra.mxu0 0.0
        %572 = vmatprep.subr.mxu0 0.0
        %573 = vmatpush1.xpose.msra.mxu0 0.0
        %574 = vmatprep.subr.mxu0 0.0
        %575 = vmatpush1.xpose.msra.mxu0 0.0
        %576 = vmatprep.subr.mxu0 0.0
        %577 = vmatpush1.xpose.msra.mxu0 0.0
        %578 = vmatprep.subr.mxu0 0.0
        %579 = vmatpush1.xpose.msra.mxu0 0.0
        %580 = vmatprep.subr.mxu0 0.0
        %581 = vmatpush1.xpose.msra.mxu0 0.0
        %582 = vmatprep.subr.mxu0 0.0
        %583 = vmatpush1.xpose.msra.mxu0 0.0
        %584 = vmatprep.subr.mxu0 0.0
        %585 = vmatpush1.xpose.msra.mxu0 0.0
        %586 = vmatprep.subr.mxu0 0.0
        %587 = vmatpush1.xpose.msra.mxu0 0.0
        %588 = vmatprep.subr.mxu0 0.0
        %589 = vmatpush1.xpose.msra.mxu0 0.0
        %590 = vmatprep.subr.mxu0 0.0
        %591 = vmatpush1.xpose.msra.mxu0 0.0
        %592 = vmatprep.subr.mxu0 0.0
        %593 = vmatpush1.xpose.msra.mxu0 0.0
        %594 = vmatprep.subr.mxu0 0.0
        %595 = vmatpush1.xpose.msra.mxu0 0.0
        %596 = vmatprep.subr.mxu0 0.0
        %597 = vmatpush1.xpose.msra.mxu0 0.0
        %598 = vmatprep.subr.mxu0 0.0
        %599 = vmatpush1.xpose.msra.mxu0 0.0
        %600 = vmatprep.subr.mxu0 0.0
        %601 = vmatpush1.xpose.msra.mxu0 0.0
        %602 = vmatprep.subr.mxu0 0.0
        %603 = vmatpush1.xpose.msra.mxu0 0.0
        %604 = vmatprep.subr.mxu0 0.0
        %605 = vmatpush1.xpose.msra.mxu0 0.0
        %606 = vmatprep.subr.mxu0 0.0
        %607 = vmatpush1.xpose.msra.mxu0 0.0
        %608 = vmatprep.subr.mxu0 0.0
        %609 = vmatpush1.xpose.msra.mxu0 0.0
        %610 = vmatprep.mubr.f32.mxu0 0.0
        %611 = vmatmul.mubr.f32.gmra.mrb[0].mxu0 %v542
        %v612 = vpop.f32.mrb[0].mxu0
        %v613 = vadd.f32 0.0, %v612
        %v614 = vpop.f32.mrb[0].mxu0
        %615 = vdwg.mxu0
        %v616 = vsel %vm376, %v613, -inf
        %617 = vmax.xlane.f32.xlu0 %v616
        %v618 = vpop.xlane.xlu0 %617
        %v619 = vsub.f32 %v613, %v618
        %v620 = vmul.f32 %v619, 1.442695
        %v621 = vpow.pop %v620
        %v622 = vsel %vm376, %v621, 0.0
        %623 = vadd.xlane.f32.xlu0 %v622
        %v624 = vpop.xlane.xlu0 %623
        %v625 = vrcp.pop %v624
        %v626 = vmul.f32 %v621, %v625
        %627 = vrot.lane.b32.xlu0 %v370, 56
        %v628 = vpop.permute.xlu0 %627
        %v631 = vsel %vm376, %v626, 0
        %633 = vmatprep.subr.mxu0 0.0
        %634 = vmatpush1.msra.mxu0 %v628
        %635 = vmatprep.subr.mxu0 0.0
        %636 = vmatpush1.msra.mxu0 0.0
        %637 = vmatprep.subr.mxu0 0.0
        %638 = vmatpush1.msra.mxu0 0.0
        %639 = vmatprep.subr.mxu0 0.0
        %640 = vmatpush1.msra.mxu0 0.0
        %641 = vmatprep.subr.mxu0 0.0
        %642 = vmatpush1.msra.mxu0 0.0
        %643 = vmatprep.subr.mxu0 0.0
        %644 = vmatpush1.msra.mxu0 0.0
        %645 = vmatprep.subr.mxu0 0.0
        %646 = vmatpush1.msra.mxu0 0.0
        %647 = vmatprep.subr.mxu0 0.0
        %648 = vmatpush1.msra.mxu0 0.0
        %649 = vmatprep.subr.mxu0 0.0
        %650 = vmatpush1.msra.mxu0 0.0
        %651 = vmatprep.subr.mxu0 0.0
        %652 = vmatpush1.msra.mxu0 0.0
        %653 = vmatprep.subr.mxu0 0.0
        %654 = vmatpush1.msra.mxu0 0.0
        %655 = vmatprep.subr.mxu0 0.0
        %656 = vmatpush1.msra.mxu0 0.0
        %657 = vmatprep.subr.mxu0 0.0
        %658 = vmatpush1.msra.mxu0 0.0
        %659 = vmatprep.subr.mxu0 0.0
        %660 = vmatpush1.msra.mxu0 0.0
        %661 = vmatprep.subr.mxu0 0.0
        %662 = vmatpush1.msra.mxu0 0.0
        %663 = vmatprep.subr.mxu0 0.0
        %664 = vmatpush1.msra.mxu0 0.0
        %665 = vmatprep.subr.mxu0 0.0
        %666 = vmatpush1.msra.mxu0 0.0
        %667 = vmatprep.subr.mxu0 0.0
        %668 = vmatpush1.msra.mxu0 0.0
        %669 = vmatprep.subr.mxu0 0.0
        %670 = vmatpush1.msra.mxu0 0.0
        %671 = vmatprep.subr.mxu0 0.0
        %672 = vmatpush1.msra.mxu0 0.0
        %673 = vmatprep.subr.mxu0 0.0
        %674 = vmatpush1.msra.mxu0 0.0
        %675 = vmatprep.subr.mxu0 0.0
        %676 = vmatpush1.msra.mxu0 0.0
        %677 = vmatprep.subr.mxu0 0.0
        %678 = vmatpush1.msra.mxu0 0.0
        %679 = vmatprep.subr.mxu0 0.0
        %680 = vmatpush1.msra.mxu0 0.0
        %681 = vmatprep.subr.mxu0 0.0
        %682 = vmatpush1.msra.mxu0 0.0
        %683 = vmatprep.subr.mxu0 0.0
        %684 = vmatpush1.msra.mxu0 0.0
        %685 = vmatprep.subr.mxu0 0.0
        %686 = vmatpush1.msra.mxu0 0.0
        %687 = vmatprep.subr.mxu0 0.0
        %688 = vmatpush1.msra.mxu0 0.0
        %689 = vmatprep.subr.mxu0 0.0
        %690 = vmatpush1.msra.mxu0 0.0
        %691 = vmatprep.subr.mxu0 0.0
        %692 = vmatpush1.msra.mxu0 0.0
        %693 = vmatprep.subr.mxu0 0.0
        %694 = vmatpush1.msra.mxu0 0.0
        %695 = vmatprep.subr.mxu0 0.0
        %696 = vmatpush1.msra.mxu0 0.0
        %697 = vmatprep.mubr.f32.mxu0 0.0
        %698 = vmatmul.mubr.f32.gmra.mrb[0].mxu0 %v631
        %v699 = vpop.f32.mrb[0].mxu0
        %v700 = vadd.f32 0.0, %v699
        %v701 = vpop.f32.mrb[0].mxu0
        %702 = vdwg.mxu0
        %703 = vrot.lane.b32.xlu0 %v370, 112
        %v704 = vpop.permute.xlu0 %703
        %705 = vrot.lane.b32.xlu0 %v370, 80
        %v706 = vpop.permute.xlu0 %705
        %v707 = vsel %vm376, %v704, 0
        %v709 = vsel %vm376, %v706, 0
        %711 = vmatprep.subr.mxu0 0.0
        %712 = vmatpush1.xpose.msra.mxu0 %v709
        %713 = vmatprep.subr.mxu0 0.0
        %714 = vmatpush1.xpose.msra.mxu0 0.0
        %715 = vmatprep.subr.mxu0 0.0
        %716 = vmatpush1.xpose.msra.mxu0 0.0
        %717 = vmatprep.subr.mxu0 0.0
        %718 = vmatpush1.xpose.msra.mxu0 0.0
        %719 = vmatprep.subr.mxu0 0.0
        %720 = vmatpush1.xpose.msra.mxu0 0.0
        %721 = vmatprep.subr.mxu0 0.0
        %722 = vmatpush1.xpose.msra.mxu0 0.0
        %723 = vmatprep.subr.mxu0 0.0
        %724 = vmatpush1.xpose.msra.mxu0 0.0
        %725 = vmatprep.subr.mxu0 0.0
        %726 = vmatpush1.xpose.msra.mxu0 0.0
        %727 = vmatprep.subr.mxu0 0.0
        %728 = vmatpush1.xpose.msra.mxu0 0.0
        %729 = vmatprep.subr.mxu0 0.0
        %730 = vmatpush1.xpose.msra.mxu0 0.0
        %731 = vmatprep.subr.mxu0 0.0
        %732 = vmatpush1.xpose.msra.mxu0 0.0
        %733 = vmatprep.subr.mxu0 0.0
        %734 = vmatpush1.xpose.msra.mxu0 0.0
        %735 = vmatprep.subr.mxu0 0.0
        %736 = vmatpush1.xpose.msra.mxu0 0.0
        %737 = vmatprep.subr.mxu0 0.0
        %738 = vmatpush1.xpose.msra.mxu0 0.0
        %739 = vmatprep.subr.mxu0 0.0
        %740 = vmatpush1.xpose.msra.mxu0 0.0
        %741 = vmatprep.subr.mxu0 0.0
        %742 = vmatpush1.xpose.msra.mxu0 0.0
        %743 = vmatprep.subr.mxu0 0.0
        %744 = vmatpush1.xpose.msra.mxu0 0.0
        %745 = vmatprep.subr.mxu0 0.0
        %746 = vmatpush1.xpose.msra.mxu0 0.0
        %747 = vmatprep.subr.mxu0 0.0
        %748 = vmatpush1.xpose.msra.mxu0 0.0
        %749 = vmatprep.subr.mxu0 0.0
        %750 = vmatpush1.xpose.msra.mxu0 0.0
        %751 = vmatprep.subr.mxu0 0.0
        %752 = vmatpush1.xpose.msra.mxu0 0.0
        %753 = vmatprep.subr.mxu0 0.0
        %754 = vmatpush1.xpose.msra.mxu0 0.0
        %755 = vmatprep.subr.mxu0 0.0
        %756 = vmatpush1.xpose.msra.mxu0 0.0
        %757 = vmatprep.subr.mxu0 0.0
        %758 = vmatpush1.xpose.msra.mxu0 0.0
        %759 = vmatprep.subr.mxu0 0.0
        %760 = vmatpush1.xpose.msra.mxu0 0.0
        %761 = vmatprep.subr.mxu0 0.0
        %762 = vmatpush1.xpose.msra.mxu0 0.0
        %763 = vmatprep.subr.mxu0 0.0
        %764 = vmatpush1.xpose.msra.mxu0 0.0
        %765 = vmatprep.subr.mxu0 0.0
        %766 = vmatpush1.xpose.msra.mxu0 0.0
        %767 = vmatprep.subr.mxu0 0.0
        %768 = vmatpush1.xpose.msra.mxu0 0.0
        %769 = vmatprep.subr.mxu0 0.0
        %770 = vmatpush1.xpose.msra.mxu0 0.0
        %771 = vmatprep.subr.mxu0 0.0
        %772 = vmatpush1.xpose.msra.mxu0 0.0
        %773 = vmatprep.subr.mxu0 0.0
        %774 = vmatpush1.xpose.msra.mxu0 0.0
        %775 = vmatprep.mubr.f32.mxu0 0.0
        %776 = vmatmul.mubr.f32.gmra.mrb[0].mxu0 %v707
        %v777 = vpop.f32.mrb[0].mxu0
        %v778 = vadd.f32 0.0, %v777
        %v779 = vpop.f32.mrb[0].mxu0
        %780 = vdwg.mxu0
        %v781 = vsel %vm376, %v778, -inf
        %782 = vmax.xlane.f32.xlu0 %v781
        %v783 = vpop.xlane.xlu0 %782
        %v784 = vsub.f32 %v778, %v783
        %v785 = vmul.f32 %v784, 1.442695
        %v786 = vpow.pop %v785
        %v787 = vsel %vm376, %v786, 0.0
        %788 = vadd.xlane.f32.xlu0 %v787
        %v789 = vpop.xlane.xlu0 %788
        %v790 = vrcp.pop %v789
        %v791 = vmul.f32 %v786, %v790
        %792 = vrot.lane.b32.xlu0 %v370, 48
        %v793 = vpop.permute.xlu0 %792
        %v796 = vsel %vm376, %v791, 0
        %798 = vmatprep.subr.mxu0 0.0
        %799 = vmatpush1.msra.mxu0 %v793
        %800 = vmatprep.subr.mxu0 0.0
        %801 = vmatpush1.msra.mxu0 0.0
        %802 = vmatprep.subr.mxu0 0.0
        %803 = vmatpush1.msra.mxu0 0.0
        %804 = vmatprep.subr.mxu0 0.0
        %805 = vmatpush1.msra.mxu0 0.0
        %806 = vmatprep.subr.mxu0 0.0
        %807 = vmatpush1.msra.mxu0 0.0
        %808 = vmatprep.subr.mxu0 0.0
        %809 = vmatpush1.msra.mxu0 0.0
        %810 = vmatprep.subr.mxu0 0.0
        %811 = vmatpush1.msra.mxu0 0.0
        %812 = vmatprep.subr.mxu0 0.0
        %813 = vmatpush1.msra.mxu0 0.0
        %814 = vmatprep.subr.mxu0 0.0
        %815 = vmatpush1.msra.mxu0 0.0
        %816 = vmatprep.subr.mxu0 0.0
        %817 = vmatpush1.msra.mxu0 0.0
        %818 = vmatprep.subr.mxu0 0.0
        %819 = vmatpush1.msra.mxu0 0.0
        %820 = vmatprep.subr.mxu0 0.0
        %821 = vmatpush1.msra.mxu0 0.0
        %822 = vmatprep.subr.mxu0 0.0
        %823 = vmatpush1.msra.mxu0 0.0
        %824 = vmatprep.subr.mxu0 0.0
        %825 = vmatpush1.msra.mxu0 0.0
        %826 = vmatprep.subr.mxu0 0.0
        %827 = vmatpush1.msra.mxu0 0.0
        %828 = vmatprep.subr.mxu0 0.0
        %829 = vmatpush1.msra.mxu0 0.0
        %830 = vmatprep.subr.mxu0 0.0
        %831 = vmatpush1.msra.mxu0 0.0
        %832 = vmatprep.subr.mxu0 0.0
        %833 = vmatpush1.msra.mxu0 0.0
        %834 = vmatprep.subr.mxu0 0.0
        %835 = vmatpush1.msra.mxu0 0.0
        %836 = vmatprep.subr.mxu0 0.0
        %837 = vmatpush1.msra.mxu0 0.0
        %838 = vmatprep.subr.mxu0 0.0
        %839 = vmatpush1.msra.mxu0 0.0
        %840 = vmatprep.subr.mxu0 0.0
        %841 = vmatpush1.msra.mxu0 0.0
        %842 = vmatprep.subr.mxu0 0.0
        %843 = vmatpush1.msra.mxu0 0.0
        %844 = vmatprep.subr.mxu0 0.0
        %845 = vmatpush1.msra.mxu0 0.0
        %846 = vmatprep.subr.mxu0 0.0
        %847 = vmatpush1.msra.mxu0 0.0
        %848 = vmatprep.subr.mxu0 0.0
        %849 = vmatpush1.msra.mxu0 0.0
        %850 = vmatprep.subr.mxu0 0.0
        %851 = vmatpush1.msra.mxu0 0.0
        %852 = vmatprep.subr.mxu0 0.0
        %853 = vmatpush1.msra.mxu0 0.0
        %854 = vmatprep.subr.mxu0 0.0
        %855 = vmatpush1.msra.mxu0 0.0
        %856 = vmatprep.subr.mxu0 0.0
        %857 = vmatpush1.msra.mxu0 0.0
        %858 = vmatprep.subr.mxu0 0.0
        %859 = vmatpush1.msra.mxu0 0.0
        %860 = vmatprep.subr.mxu0 0.0
        %861 = vmatpush1.msra.mxu0 0.0
        %862 = vmatprep.mubr.f32.mxu0 0.0
        %863 = vmatmul.mubr.f32.gmra.mrb[0].mxu0 %v796
        %v864 = vpop.f32.mrb[0].mxu0
        %v865 = vadd.f32 0.0, %v864
        %v866 = vpop.f32.mrb[0].mxu0
        %867 = vdwg.mxu0
        %868 = vrot.lane.b32.xlu0 %v370, 104
        %v869 = vpop.permute.xlu0 %868
        %870 = vrot.lane.b32.xlu0 %v370, 72
        %v871 = vpop.permute.xlu0 %870
        %v872 = vsel %vm376, %v869, 0
        %v874 = vsel %vm376, %v871, 0
        %876 = vmatprep.subr.mxu0 0.0
        %877 = vmatpush1.xpose.msra.mxu0 %v874
        %878 = vmatprep.subr.mxu0 0.0
        %879 = vmatpush1.xpose.msra.mxu0 0.0
        %880 = vmatprep.subr.mxu0 0.0
        %881 = vmatpush1.xpose.msra.mxu0 0.0
        %882 = vmatprep.subr.mxu0 0.0
        %883 = vmatpush1.xpose.msra.mxu0 0.0
        %884 = vmatprep.subr.mxu0 0.0
        %885 = vmatpush1.xpose.msra.mxu0 0.0
        %886 = vmatprep.subr.mxu0 0.0
        %887 = vmatpush1.xpose.msra.mxu0 0.0
        %888 = vmatprep.subr.mxu0 0.0
        %889 = vmatpush1.xpose.msra.mxu0 0.0
        %890 = vmatprep.subr.mxu0 0.0
        %891 = vmatpush1.xpose.msra.mxu0 0.0
        %892 = vmatprep.subr.mxu0 0.0
        %893 = vmatpush1.xpose.msra.mxu0 0.0
        %894 = vmatprep.subr.mxu0 0.0
        %895 = vmatpush1.xpose.msra.mxu0 0.0
        %896 = vmatprep.subr.mxu0 0.0
        %897 = vmatpush1.xpose.msra.mxu0 0.0
        %898 = vmatprep.subr.mxu0 0.0
        %899 = vmatpush1.xpose.msra.mxu0 0.0
        %900 = vmatprep.subr.mxu0 0.0
        %901 = vmatpush1.xpose.msra.mxu0 0.0
        %902 = vmatprep.subr.mxu0 0.0
        %903 = vmatpush1.xpose.msra.mxu0 0.0
        %904 = vmatprep.subr.mxu0 0.0
        %905 = vmatpush1.xpose.msra.mxu0 0.0
        %906 = vmatprep.subr.mxu0 0.0
        %907 = vmatpush1.xpose.msra.mxu0 0.0
        %908 = vmatprep.subr.mxu0 0.0
        %909 = vmatpush1.xpose.msra.mxu0 0.0
        %910 = vmatprep.subr.mxu0 0.0
        %911 = vmatpush1.xpose.msra.mxu0 0.0
        %912 = vmatprep.subr.mxu0 0.0
        %913 = vmatpush1.xpose.msra.mxu0 0.0
        %914 = vmatprep.subr.mxu0 0.0
        %915 = vmatpush1.xpose.msra.mxu0 0.0
        %916 = vmatprep.subr.mxu0 0.0
        %917 = vmatpush1.xpose.msra.mxu0 0.0
        %918 = vmatprep.subr.mxu0 0.0
        %919 = vmatpush1.xpose.msra.mxu0 0.0
        %920 = vmatprep.subr.mxu0 0.0
        %921 = vmatpush1.xpose.msra.mxu0 0.0
        %922 = vmatprep.subr.mxu0 0.0
        %923 = vmatpush1.xpose.msra.mxu0 0.0
        %924 = vmatprep.subr.mxu0 0.0
        %925 = vmatpush1.xpose.msra.mxu0 0.0
        %926 = vmatprep.subr.mxu0 0.0
        %927 = vmatpush1.xpose.msra.mxu0 0.0
        %928 = vmatprep.subr.mxu0 0.0
        %929 = vmatpush1.xpose.msra.mxu0 0.0
        %930 = vmatprep.subr.mxu0 0.0
        %931 = vmatpush1.xpose.msra.mxu0 0.0
        %932 = vmatprep.subr.mxu0 0.0
        %933 = vmatpush1.xpose.msra.mxu0 0.0
        %934 = vmatprep.subr.mxu0 0.0
        %935 = vmatpush1.xpose.msra.mxu0 0.0
        %936 = vmatprep.subr.mxu0 0.0
        %937 = vmatpush1.xpose.msra.mxu0 0.0
        %938 = vmatprep.subr.mxu0 0.0
        %939 = vmatpush1.xpose.msra.mxu0 0.0
        %940 = vmatprep.mubr.f32.mxu0 0.0
        %941 = vmatmul.mubr.f32.gmra.mrb[0].mxu0 %v872
        %v942 = vpop.f32.mrb[0].mxu0
        %v943 = vadd.f32 0.0, %v942
        %v944 = vpop.f32.mrb[0].mxu0
        %945 = vdwg.mxu0
        %v946 = vsel %vm376, %v943, -inf
        %947 = vmax.xlane.f32.xlu0 %v946
        %v948 = vpop.xlane.xlu0 %947
        %v949 = vsub.f32 %v943, %v948
        %v950 = vmul.f32 %v949, 1.442695
        %v951 = vpow.pop %v950
        %v952 = vsel %vm376, %v951, 0.0
        %953 = vadd.xlane.f32.xlu0 %v952
        %v954 = vpop.xlane.xlu0 %953
        %v955 = vrcp.pop %v954
        %v956 = vmul.f32 %v951, %v955
        %957 = vrot.lane.b32.xlu0 %v370, 40
        %v958 = vpop.permute.xlu0 %957
        %v961 = vsel %vm376, %v956, 0
        %963 = vmatprep.subr.mxu0 0.0
        %964 = vmatpush1.msra.mxu0 %v958
        %965 = vmatprep.subr.mxu0 0.0
        %966 = vmatpush1.msra.mxu0 0.0
        %967 = vmatprep.subr.mxu0 0.0
        %968 = vmatpush1.msra.mxu0 0.0
        %969 = vmatprep.subr.mxu0 0.0
        %970 = vmatpush1.msra.mxu0 0.0
        %971 = vmatprep.subr.mxu0 0.0
        %972 = vmatpush1.msra.mxu0 0.0
        %973 = vmatprep.subr.mxu0 0.0
        %974 = vmatpush1.msra.mxu0 0.0
        %975 = vmatprep.subr.mxu0 0.0
        %976 = vmatpush1.msra.mxu0 0.0
        %977 = vmatprep.subr.mxu0 0.0
        %978 = vmatpush1.msra.mxu0 0.0
        %979 = vmatprep.subr.mxu0 0.0
        %980 = vmatpush1.msra.mxu0 0.0
        %981 = vmatprep.subr.mxu0 0.0
        %982 = vmatpush1.msra.mxu0 0.0
        %983 = vmatprep.subr.mxu0 0.0
        %984 = vmatpush1.msra.mxu0 0.0
        %985 = vmatprep.subr.mxu0 0.0
        %986 = vmatpush1.msra.mxu0 0.0
        %987 = vmatprep.subr.mxu0 0.0
        %988 = vmatpush1.msra.mxu0 0.0
        %989 = vmatprep.subr.mxu0 0.0
        %990 = vmatpush1.msra.mxu0 0.0
        %991 = vmatprep.subr.mxu0 0.0
        %992 = vmatpush1.msra.mxu0 0.0
        %993 = vmatprep.subr.mxu0 0.0
        %994 = vmatpush1.msra.mxu0 0.0
        %995 = vmatprep.subr.mxu0 0.0
        %996 = vmatpush1.msra.mxu0 0.0
        %997 = vmatprep.subr.mxu0 0.0
        %998 = vmatpush1.msra.mxu0 0.0
        %999 = vmatprep.subr.mxu0 0.0
        %1000 = vmatpush1.msra.mxu0 0.0
        %1001 = vmatprep.subr.mxu0 0.0
        %1002 = vmatpush1.msra.mxu0 0.0
        %1003 = vmatprep.subr.mxu0 0.0
        %1004 = vmatpush1.msra.mxu0 0.0
        %1005 = vmatprep.subr.mxu0 0.0
        %1006 = vmatpush1.msra.mxu0 0.0
        %1007 = vmatprep.subr.mxu0 0.0
        %1008 = vmatpush1.msra.mxu0 0.0
        %1009 = vmatprep.subr.mxu0 0.0
        %1010 = vmatpush1.msra.mxu0 0.0
        %1011 = vmatprep.subr.mxu0 0.0
        %1012 = vmatpush1.msra.mxu0 0.0
        %1013 = vmatprep.subr.mxu0 0.0
        %1014 = vmatpush1.msra.mxu0 0.0
        %1015 = vmatprep.subr.mxu0 0.0
        %1016 = vmatpush1.msra.mxu0 0.0
        %1017 = vmatprep.subr.mxu0 0.0
        %1018 = vmatpush1.msra.mxu0 0.0
        %1019 = vmatprep.subr.mxu0 0.0
        %1020 = vmatpush1.msra.mxu0 0.0
        %1021 = vmatprep.subr.mxu0 0.0
        %1022 = vmatpush1.msra.mxu0 0.0
        %1023 = vmatprep.subr.mxu0 0.0
        %1024 = vmatpush1.msra.mxu0 0.0
        %1025 = vmatprep.subr.mxu0 0.0
        %1026 = vmatpush1.msra.mxu0 0.0
        %1027 = vmatprep.mubr.f32.mxu0 0.0
        %1028 = vmatmul.mubr.f32.gmra.mrb[0].mxu0 %v961
        %v1029 = vpop.f32.mrb[0].mxu0
        %v1030 = vadd.f32 0.0, %v1029
        %v1031 = vpop.f32.mrb[0].mxu0
        %1032 = vdwg.mxu0
        %1034 = vrot.lane.b32.xlu0 %v700, 8
        %v1035 = vpop.permute.xlu0 %1034
        %1038 = vrot.lane.b32.xlu0 %v865, 16
        %v1039 = vpop.permute.xlu0 %1038
        %1042 = vrot.lane.b32.xlu0 %v1030, 24
        %v1043 = vpop.permute.xlu0 %1042
        %v1045 = vsel %vm376, %v535, %v1035
        %vm1046 = vcmask 130048
        %v1047 = vsel %vm1046, %v1045, %v1039
        %vm1048 = vcmask 195584
        %v1049 = vsel %vm1048, %v1047, %v1043
        %v1050 = vld [vmem:[#allocation7] sm:$0xff]
        %v1051 = vld [vmem:[#allocation7 + $0x8] sm:$0xff]
        %v1052 = vld [vmem:[#allocation7 + $0x10] sm:$0xff]
        %v1053 = vld [vmem:[#allocation7 + $0x18] sm:$0xff]
        %v1054 = vld [vmem:[%s4] sm:$0x1]
        %v1056 = vlaneseq
        %v1057 = vshrl.u32 %v1056, 7
        %v1058 = vsub.s32 0, %v1057
        %v1059 = vrot.slane %v1054, %v1058
        %v1062 = vsel %vm299, %v1049, 0
        %1064 = vmatprep.subr.mxu0 0.0
        %1065 = vmatpush1.msra.mxu0 %v1050
        %1066 = vmatprep.subr.mxu0 0.0
        %1067 = vmatpush1.msra.mxu0 %v1051
        %1068 = vmatprep.subr.mxu0 0.0
        %1069 = vmatpush1.msra.mxu0 %v1052
        %1070 = vmatprep.subr.mxu0 0.0
        %1071 = vmatpush1.msra.mxu0 %v1053
        %1072 = vmatprep.subr.mxu0 0.0
        %1073 = vmatpush1.msra.mxu0 0.0
        %1074 = vmatprep.subr.mxu0 0.0
        %1075 = vmatpush1.msra.mxu0 0.0
        %1076 = vmatprep.subr.mxu0 0.0
        %1077 = vmatpush1.msra.mxu0 0.0
        %1078 = vmatprep.subr.mxu0 0.0
        %1079 = vmatpush1.msra.mxu0 0.0
        %1080 = vmatprep.subr.mxu0 0.0
        %1081 = vmatpush1.msra.mxu0 0.0
        %1082 = vmatprep.subr.mxu0 0.0
        %1083 = vmatpush1.msra.mxu0 0.0
        %1084 = vmatprep.subr.mxu0 0.0
        %1085 = vmatpush1.msra.mxu0 0.0
        %1086 = vmatprep.subr.mxu0 0.0
        %1087 = vmatpush1.msra.mxu0 0.0
        %1088 = vmatprep.subr.mxu0 0.0
        %1089 = vmatpush1.msra.mxu0 0.0
        %1090 = vmatprep.subr.mxu0 0.0
        %1091 = vmatpush1.msra.mxu0 0.0
        %1092 = vmatprep.subr.mxu0 0.0
        %1093 = vmatpush1.msra.mxu0 0.0
        %1094 = vmatprep.subr.mxu0 0.0
        %1095 = vmatpush1.msra.mxu0 0.0
        %1096 = vmatprep.subr.mxu0 0.0
        %1097 = vmatpush1.msra.mxu0 0.0
        %1098 = vmatprep.subr.mxu0 0.0
        %1099 = vmatpush1.msra.mxu0 0.0
        %1100 = vmatprep.subr.mxu0 0.0
        %1101 = vmatpush1.msra.mxu0 0.0
        %1102 = vmatprep.subr.mxu0 0.0
        %1103 = vmatpush1.msra.mxu0 0.0
        %1104 = vmatprep.subr.mxu0 0.0
        %1105 = vmatpush1.msra.mxu0 0.0
        %1106 = vmatprep.subr.mxu0 0.0
        %1107 = vmatpush1.msra.mxu0 0.0
        %1108 = vmatprep.subr.mxu0 0.0
        %1109 = vmatpush1.msra.mxu0 0.0
        %1110 = vmatprep.subr.mxu0 0.0
        %1111 = vmatpush1.msra.mxu0 0.0
        %1112 = vmatprep.subr.mxu0 0.0
        %1113 = vmatpush1.msra.mxu0 0.0
        %1114 = vmatprep.subr.mxu0 0.0
        %1115 = vmatpush1.msra.mxu0 0.0
        %1116 = vmatprep.subr.mxu0 0.0
        %1117 = vmatpush1.msra.mxu0 0.0
        %1118 = vmatprep.subr.mxu0 0.0
        %1119 = vmatpush1.msra.mxu0 0.0
        %1120 = vmatprep.subr.mxu0 0.0
        %1121 = vmatpush1.msra.mxu0 0.0
        %1122 = vmatprep.subr.mxu0 0.0
        %1123 = vmatpush1.msra.mxu0 0.0
        %1124 = vmatprep.subr.mxu0 0.0
        %1125 = vmatpush1.msra.mxu0 0.0
        %1126 = vmatprep.subr.mxu0 0.0
        %1127 = vmatpush1.msra.mxu0 0.0
        %1128 = vmatprep.mubr.f32.mxu0 0.0
        %1129 = vmatmul.mubr.f32.gmra.mrb[0].mxu0 %v1062
        %v1130 = vpop.f32.mrb[0].mxu0
        %v1131 = vadd.f32 %v1059, %v1130
        %v1132 = vpop.f32.mrb[0].mxu0
        %1133 = vdwg.mxu0
        %1134 = vst.msk [vmem:[%s286] sm:$0xff] %vm299, %v1131
        %s1135 = sand.u32 %s157, 1
        %s1136 = scalar_lea.sflag [#allocation4], %s1135
        %s1137 = sand.u32 %s157, 1
        %s1138 = smul.addr %s1137, 8
        %s1139 = scalar_lea.vmem [#allocation8], %s1138
        // Predicated region
        $region53: #{tpu_custom_call.1} parent=39 // pred_check
          %p1140 = pneg %p167
        $region54: #{tpu_custom_call.1} parent=39 // pred_check_branch
          %1142 = sbr.rel (%p1140) target = $region56
        $region55: #{tpu_custom_call.1} parent=39 // pred_region
          %s1144 = ssub.s32 128, 128
          %1145 = vsyncadd %s1136, %s1144
          %s1146 = smul.addr %s27, 2
          %s1147 = sadd.s32 %s28, %s1146
          %s1148 = smul.addr %s1147, 128
          %s1149 = scalar_lea.hbm %s5, %s1148
          %s1151 = sshll.u32 %s1139, 4
          %s1152 = int_to_ptr.vmem [resolvable:$true] %s1151
          %1154 = dma.vmem_to_hbm [thread:$0]  %s1152, 128, %s1149, %s1136
        $region56: #{tpu_custom_call.1} parent=39 // pred_fallthru
          _
      $region40: #{tpu_custom_call.1} parent=5 // pred_fallthru
        _
      %p1155 = scmp.le.s32.totalorder 2, %s18
      // Predicated region
      $region57: #{tpu_custom_call.1} parent=5 // pred_check
        %p1156 = pneg %p1155
      $region58: #{tpu_custom_call.1} parent=5 // pred_check_branch
        %1158 = sbr.rel (%p1156) target = $region60
      $region59: #{tpu_custom_call.1} parent=5 // pred_region
        %s1159 = ssub.s32 %s18, 2
        // Predicated region
        $region61: #{tpu_custom_call.1} parent=59 // pred_check
          %p1160 = pneg %p173
        $region62: #{tpu_custom_call.1} parent=59 // pred_check_branch
          %1162 = sbr.rel (%p1160) target = $region64
        $region63: #{tpu_custom_call.1} parent=59 // pred_region
          %s1163 = sand.u32 %s158, 1
          %s1164 = scalar_lea.sflag [#allocation4], %s1163
          %s1165 = sand.u32 %s158, 1
          %s1166 = smul.addr %s1165, 8
          %s1167 = scalar_lea.vmem [#allocation8], %s1166
          %1168 = dma.done %s1164, 128
        $region64: #{tpu_custom_call.1} parent=59 // pred_fallthru
          _
      $region60: #{tpu_custom_call.1} parent=5 // pred_fallthru
        _
    $region6: #{tpu_custom_call.1} parent=1 // loop_footer
      %s22 = sadd.s32 1, %s18
    $region7: #{tpu_custom_call.1} parent=1 // loop_footer_branch
      %17 = sbr.rel target = $region3
    $region8: #{tpu_custom_call.1} parent=1 // loop_exit
      _
    %1169 = vsyncpa [#allocation3], 1
    %s1170 = scalar_lea.sflag [#allocation3], 1
    %1171 = vsyncpa %s1170, 1
    %1172 = vsyncpa [#allocation6], 1
    %1173 = vsyncpa [#allocation4], 1
    %s1174 = scalar_lea.sflag [#allocation4], 1
    %1175 = vsyncpa %s1174, 1

// kernel: tpu_custom_call.1
$region0: #{tpu_custom_call.1}
  #allocation0 [shape = 'u32[]', space=smem, size = 0x4, offset = 0x4, fixed_abs, tag = 'smem constant byte address 0x4 - core index']
  #allocation1 [shape = 'u32[144,128]{1,0:T(1,128)}', space=vmem, size = 0x12000, scoped, tag = 'internal scratch']
  %s0 = inlined_call_operand.hbm [shape: f32[2,16,32], index: 0, kind: input, shape index: {}]
  %s1 = inlined_call_operand.hbm [shape: f32[32,96], index: 1, kind: input, shape index: {}]
  %s2 = inlined_call_operand.vmem [shape: f32[1,96], index: 2, kind: input, shape index: {}]
  %s3 = inlined_call_operand.hbm [shape: f32[32,32], index: 3, kind: input, shape index: {}]
  %s4 = inlined_call_operand.vmem [shape: f32[1,32], index: 4, kind: input, shape index: {}]
  %s5 = inlined_call_operand.hbm [shape: f32[2,16,32], index: 5, kind: output, shape index: {}]
  %s6 = sld [smem:[#allocation0]]
  $region65: #{tpu_custom_call.1} parent=0
    _
  %s8 = ssub.s32 1, %s6
  %s9 = scalar_select 0, %s8, %s6
  $region1: #{tpu_custom_call.1} parent=0
    #allocation2 [shape = 'u8[8192]{0}', space=vmem, size = 0x2000, scoped, tag = 'input window, operand 0']
    #allocation3 [shape = 's32[2]{0}', space=sflag, size = 0x8, scoped, tag = 'scoped memory for tpu_custom_call.1']
    #allocation4 [shape = 's32[2]{0}', space=sflag, size = 0x8, scoped, tag = 'scoped memory for tpu_custom_call.1']
    #allocation5 [shape = 'u8[16384]{0}', space=vmem, size = 0x4000, scoped, tag = 'input window, operand 1, single buffered']
    #allocation6 [shape = 's32[1]{0}', space=sflag, size = 0x4, scoped, tag = 'scoped memory for tpu_custom_call.1']
    #allocation7 [shape = 'u8[16384]{0}', space=vmem, size = 0x4000, scoped, tag = 'input window, operand 3, single buffered']
    #allocation8 [shape = 'u8[8192]{0}', space=vmem, size = 0x2000, scoped, tag = 'output window, operand 0']
    %10 = vsyncpa [#allocation3], 0
    %s11 = scalar_lea.sflag [#allocation3], 1
    %12 = vsyncpa %s11, 0
    %13 = vsyncpa [#allocation6], 0
    %14 = vsyncpa [#allocation4], 0
    %s15 = scalar_lea.sflag [#allocation4], 1
    %16 = vsyncpa %s15, 0
    loop: start=0, step=1, limit=6
    $region2: #{tpu_custom_call.1} parent=1 // loop_pre_header
      _
    $region3: #{tpu_custom_call.1} parent=1 // loop_header
      %s18 = sphi 0, %s22
      %p19 = scmp.ge.s32.totalorder %s18, 6
      %s25 = sphi 0, %s37
      %s26 = sphi 0, %s33
      %s27 = sphi 0, %s25
      %s28 = sphi 0, %s26
      %s29 = sphi 0, %s27
      %s30 = sphi 0, %s28
      %s42 = sphi 0, %s44
      %s45 = sphi 0, %s42
      %s46 = sphi 0, %s45
      %s62 = sphi 0, %s46
      %s66 = sphi 0, %s66
      %s68 = sphi 0, %s66
      %s69 = sphi 0, %s68
      %s83 = sphi 0, %s69
      %s87 = sphi 0, %s87
      %s89 = sphi 0, %s87
      %s90 = sphi 0, %s89
      %s104 = sphi 0, %s90
      %s108 = sphi 0, %s108
      %s110 = sphi 0, %s108
      %s111 = sphi 0, %s110
      %s125 = sphi 0, %s111
      %s129 = sphi 0, %s129
      %s131 = sphi 0, %s129
      %s132 = sphi 0, %s131
      %s146 = sphi 0, %s132
      %s154 = sphi 0, %s156
      %s157 = sphi 0, %s154
      %s158 = sphi 0, %s157
      %s174 = sphi 0, %s158
    $region4: #{tpu_custom_call.1} parent=1 // loop_header_branch
      %21 = sbr.rel (%p19) target = $region8
    $region5: #{tpu_custom_call.1} parent=1 // loop_body
      %s23 = ssub.s32 %s18, 1
      %s24 = ssub.s32 %s18, 2
      %s31 = sadd.s32 1, %s26
      %p32 = scmp.ge.s32.totalorder %s31, 2
      %s33 = scalar_select %p32, 0, %s31
      %s34 = sadd.s32 1, %s25
      %s35 = scalar_select %p32, %s34, %s25
      %p36 = scmp.ge.s32.totalorder %s35, 2
      %s37 = scalar_select %p36, 0, %s35
      %s38 = ssub.s32 %s25, %s37
      %s39 = ssub.s32 %s26, %s33
      %s40 = sor.u32 %s38, %s39
      %p41 = scmp.eq.s32.totalorder %s40, 0
      %s43 = sadd.s32 %s42, 1
      %s44 = scalar_select %p41, %s42, %s43
      %p47 = pneg %p41
      %p48 = scmp.eq.s32.totalorder %s18, 3
      %p49 = por %p47, %p48
      %p50 = scmp.ne.s32.totalorder %s42, %s45
      %p51 = scmp.eq.s32.totalorder %s18, 0
      %p52 = por %p50, %p51
      %p53 = scmp.ne.s32.totalorder %s42, %s45
      %p54 = scmp.eq.s32.totalorder %s23, 3
      %p55 = por %p53, %p54
      %p56 = scmp.ne.s32.totalorder %s45, %s46
      %p57 = scmp.eq.s32.totalorder %s23, 0
      %p58 = por %p56, %p57
      %p59 = scmp.ne.s32.totalorder %s45, %s46
      %p60 = scmp.eq.s32.totalorder %s24, 3
      %p61 = por %p59, %p60
      %p63 = scmp.ne.s32.totalorder %s46, %s62
      %p64 = scmp.eq.s32.totalorder %s24, 0
      %p65 = por %p63, %p64
      %s67 = sadd.s32 %s66, 1
      %p70 = scmp.eq.s32.totalorder %s18, 3
      %p71 = scmp.ne.s32.totalorder %s66, %s68
      %p72 = scmp.eq.s32.totalorder %s18, 0
      %p73 = por %p71, %p72
      %p74 = scmp.ne.s32.totalorder %s66, %s68
      %p75 = scmp.eq.s32.totalorder %s23, 3
      %p76 = por %p74, %p75
      %p77 = scmp.ne.s32.totalorder %s68, %s69
      %p78 = scmp.eq.s32.totalorder %s23, 0
      %p79 = por %p77, %p78
      %p80 = scmp.ne.s32.totalorder %s68, %s69
      %p81 = scmp.eq.s32.totalorder %s24, 3
      %p82 = por %p80, %p81
      %p84 = scmp.ne.s32.totalorder %s69, %s83
      %p85 = scmp.eq.s32.totalorder %s24, 0
      %p86 = por %p84, %p85
      %s88 = sadd.s32 %s87, 1
      %p91 = scmp.eq.s32.totalorder %s18, 3
      %p92 = scmp.ne.s32.totalorder %s87, %s89
      %p93 = scmp.eq.s32.totalorder %s18, 0
      %p94 = por %p92, %p93
      %p95 = scmp.ne.s32.totalorder %s87, %s89
      %p96 = scmp.eq.s32.totalorder %s23, 3
      %p97 = por %p95, %p96
      %p98 = scmp.ne.s32.totalorder %s89, %s90
      %p99 = scmp.eq.s32.totalorder %s23, 0
      %p100 = por %p98, %p99
      %p101 = scmp.ne.s32.totalorder %s89, %s90
      %p102 = scmp.eq.s32.totalorder %s24, 3
      %p103 = por %p101, %p102
      %p105 = scmp.ne.s32.totalorder %s90, %s104
      %p106 = scmp.eq.s32.totalorder %s24, 0
      %p107 = por %p105, %p106
      %s109 = sadd.s32 %s108, 1
      %p112 = scmp.eq.s32.totalorder %s18, 3
      %p113 = scmp.ne.s32.totalorder %s108, %s110
      %p114 = scmp.eq.s32.totalorder %s18, 0
      %p115 = por %p113, %p114
      %p116 = scmp.ne.s32.totalorder %s108, %s110
      %p117 = scmp.eq.s32.totalorder %s23, 3
      %p118 = por %p116, %p117
      %p119 = scmp.ne.s32.totalorder %s110, %s111
      %p120 = scmp.eq.s32.totalorder %s23, 0
      %p121 = por %p119, %p120
      %p122 = scmp.ne.s32.totalorder %s110, %s111
      %p123 = scmp.eq.s32.totalorder %s24, 3
      %p124 = por %p122, %p123
      %p126 = scmp.ne.s32.totalorder %s111, %s125
      %p127 = scmp.eq.s32.totalorder %s24, 0
      %p128 = por %p126, %p127
      %s130 = sadd.s32 %s129, 1
      %p133 = scmp.eq.s32.totalorder %s18, 3
      %p134 = scmp.ne.s32.totalorder %s129, %s131
      %p135 = scmp.eq.s32.totalorder %s18, 0
      %p136 = por %p134, %p135
      %p137 = scmp.ne.s32.totalorder %s129, %s131
      %p138 = scmp.eq.s32.totalorder %s23, 3
      %p139 = por %p137, %p138
      %p140 = scmp.ne.s32.totalorder %s131, %s132
      %p141 = scmp.eq.s32.totalorder %s23, 0
      %p142 = por %p140, %p141
      %p143 = scmp.ne.s32.totalorder %s131, %s132
      %p144 = scmp.eq.s32.totalorder %s24, 3
      %p145 = por %p143, %p144
      %p147 = scmp.ne.s32.totalorder %s132, %s146
      %p148 = scmp.eq.s32.totalorder %s24, 0
      %p149 = por %p147, %p148
      %s150 = ssub.s32 %s25, %s37
      %s151 = ssub.s32 %s26, %s33
      %s152 = sor.u32 %s150, %s151
      %p153 = scmp.eq.s32.totalorder %s152, 0
      %s155 = sadd.s32 %s154, 1
      %s156 = scalar_select %p153, %s154, %s155
      %p159 = pneg %p153
      %p160 = scmp.eq.s32.totalorder %s18, 3
      %p161 = por %p159, %p160
      %p162 = scmp.ne.s32.totalorder %s154, %s157
      %p163 = scmp.eq.s32.totalorder %s18, 0
      %p164 = por %p162, %p163
      %p165 = scmp.ne.s32.totalorder %s154, %s157
      %p166 = scmp.eq.s32.totalorder %s23, 3
      %p167 = por %p165, %p166
      %p168 = scmp.ne.s32.totalorder %s157, %s158
      %p169 = scmp.eq.s32.totalorder %s23, 0
      %p170 = por %p168, %p169
      %p171 = scmp.ne.s32.totalorder %s157, %s158
      %p172 = scmp.eq.s32.totalorder %s24, 3
      %p173 = por %p171, %p172
      %p175 = scmp.ne.s32.totalorder %s158, %s174
      %p176 = scmp.eq.s32.totalorder %s24, 0
      %p177 = por %p175, %p176
      %p178 = scmp.le.s32.totalorder 1, %s18
      %p179 = scmp.lt.s32.totalorder %s18, 5
      %p180 = pnand %p178, %p179
      %p181 = pneg %p180
      // Predicated region
      $region9: #{tpu_custom_call.1} parent=5 // pred_check
        _
      $region10: #{tpu_custom_call.1} parent=5 // pred_check_branch
        %183 = sbr.rel (%p180) target = $region12
      $region11: #{tpu_custom_call.1} parent=5 // pred_region
        %s184 = ssub.s32 %s18, 1
        // Predicated region
        $region13: #{tpu_custom_call.1} parent=11 // pred_check
          %p185 = pneg %p79
        $region14: #{tpu_custom_call.1} parent=11 // pred_check_branch
          %187 = sbr.rel (%p185) target = $region16
        $region15: #{tpu_custom_call.1} parent=11 // pred_region
          %s189 = ssub.s32 512, 512
          %190 = vsyncadd [#allocation6], %s189
          %s191 = sshll.u32 [#allocation5], 4
          %s192 = int_to_ptr.vmem [resolvable:$true] %s191
          %197 = dma.hbm_to_vmem [thread:$0]  %s1, 512, %s192, [#allocation6], 128, 128, 8
        $region16: #{tpu_custom_call.1} parent=11 // pred_fallthru
          _
        // Predicated region
        $region17: #{tpu_custom_call.1} parent=11 // pred_check
          %p198 = pneg %p100
        $region18: #{tpu_custom_call.1} parent=11 // pred_check_branch
          %200 = sbr.rel (%p198) target = $region20
        $region19: #{tpu_custom_call.1} parent=11 // pred_region
          _
        $region20: #{tpu_custom_call.1} parent=11 // pred_fallthru
          _
        // Predicated region
        $region21: #{tpu_custom_call.1} parent=11 // pred_check
          %p201 = pneg %p121
        $region22: #{tpu_custom_call.1} parent=11 // pred_check_branch
          %203 = sbr.rel (%p201) target = $region24
        $region23: #{tpu_custom_call.1} parent=11 // pred_region
          %s205 = ssub.s32 512, 512
          %206 = vsyncadd [#allocation6], %s205
          %s207 = sshll.u32 [#allocation7], 4
          %s208 = int_to_ptr.vmem [resolvable:$true] %s207
          %213 = dma.hbm_to_vmem [thread:$0]  %s3, 512, %s208, [#allocation6], 128, 128, 8
        $region24: #{tpu_custom_call.1} parent=11 // pred_fallthru
          _
        // Predicated region
        $region25: #{tpu_custom_call.1} parent=11 // pred_check
          %p214 = pneg %p142
        $region26: #{tpu_custom_call.1} parent=11 // pred_check_branch
          %216 = sbr.rel (%p214) target = $region28
        $region27: #{tpu_custom_call.1} parent=11 // pred_region
          _
        $region28: #{tpu_custom_call.1} parent=11 // pred_fallthru
          _
      $region12: #{tpu_custom_call.1} parent=5 // pred_fallthru
        _
      %p217 = scmp.lt.s32.totalorder %s18, 4
      // Predicated region
      $region29: #{tpu_custom_call.1} parent=5 // pred_check
        %p218 = pneg %p217
      $region30: #{tpu_custom_call.1} parent=5 // pred_check_branch
        %220 = sbr.rel (%p218) target = $region32
      $region31: #{tpu_custom_call.1} parent=5 // pred_region
        // Predicated region
        $region33: #{tpu_custom_call.1} parent=31 // pred_check
          %p221 = pneg %p52
        $region34: #{tpu_custom_call.1} parent=31 // pred_check_branch
          %223 = sbr.rel (%p221) target = $region36
        $region35: #{tpu_custom_call.1} parent=31 // pred_region
          %s224 = sand.u32 %s42, 1
          %s225 = scalar_lea.sflag [#allocation3], %s224
          %s226 = sand.u32 %s42, 1
          %s227 = smul.addr %s226, 8
          %s228 = scalar_lea.vmem [#allocation2], %s227
          %s230 = ssub.s32 128, 128
          %231 = vsyncadd %s225, %s230
          %s232 = smul.addr %s25, 2
          %s233 = sadd.s32 %s26, %s232
          %s234 = smul.addr %s233, 128
          %s235 = scalar_lea.hbm %s0, %s234
          %s237 = sshll.u32 %s228, 4
          %s238 = int_to_ptr.vmem [resolvable:$true] %s237
          %240 = dma.hbm_to_vmem [thread:$0]  %s235, 128, %s238, %s225
        $region36: #{tpu_custom_call.1} parent=31 // pred_fallthru
          _
      $region32: #{tpu_custom_call.1} parent=5 // pred_fallthru
        _
      %p241 = scmp.le.s32.totalorder 1, %s18
      %p242 = scmp.lt.s32.totalorder %s18, 5
      %p243 = pnand %p241, %p242
      %p244 = pneg %p243
      // Predicated region
      $region37: #{tpu_custom_call.1} parent=5 // pred_check
        _
      $region38: #{tpu_custom_call.1} parent=5 // pred_check_branch
        %246 = sbr.rel (%p243) target = $region40
      $region39: #{tpu_custom_call.1} parent=5 // pred_region
        %s247 = ssub.s32 %s18, 1
        %s248 = sand.u32 %s45, 1
        %s249 = scalar_lea.sflag [#allocation3], %s248
        %s250 = sand.u32 %s45, 1
        %s251 = smul.addr %s250, 8
        %s252 = scalar_lea.vmem [#allocation2], %s251
        // Predicated region
        $region41: #{tpu_custom_call.1} parent=39 // pred_check
          %p253 = pneg %p58
        $region42: #{tpu_custom_call.1} parent=39 // pred_check_branch
          %255 = sbr.rel (%p253) target = $region44
        $region43: #{tpu_custom_call.1} parent=39 // pred_region
          %256 = dma.done %s249, 128
        $region44: #{tpu_custom_call.1} parent=39 // pred_fallthru
          _
        // Predicated region
        $region45: #{tpu_custom_call.1} parent=39 // pred_check
          %p257 = pneg %p79
        $region46: #{tpu_custom_call.1} parent=39 // pred_check_branch
          %259 = sbr.rel (%p257) target = $region48
        $region47: #{tpu_custom_call.1} parent=39 // pred_region
          %260 = dma.done [#allocation6], 512
        $region48: #{tpu_custom_call.1} parent=39 // pred_fallthru
          _
        // Predicated region
        $region49: #{tpu_custom_call.1} parent=39 // pred_check
          %p261 = pneg %p121
        $region50: #{tpu_custom_call.1} parent=39 // pred_check_branch
          %263 = sbr.rel (%p261) target = $region52
        $region51: #{tpu_custom_call.1} parent=39 // pred_region
          %264 = dma.done [#allocation6], 512
        $region52: #{tpu_custom_call.1} parent=39 // pred_fallthru
          _
        %s265 = sand.u32 %s45, 1
        %s266 = scalar_lea.sflag [#allocation3], %s265
        %s267 = sand.u32 %s45, 1
        %s268 = smul.addr %s267, 8
        %s269 = scalar_lea.vmem [#allocation2], %s268
        %p270 = pneg %p58
        %p271 = pneg %p55
        %p272 = pneg %p79
        %p273 = pneg %p76
        %p274 = pneg %p100
        %p275 = pneg %p97
        %p276 = pneg %p121
        %p277 = pneg %p118
        %p278 = pneg %p142
        %p279 = pneg %p139
        %p280 = pneg %p170
        %p281 = pneg %p167
        %s282 = sand.u32 %s157, 1
        %s283 = scalar_lea.sflag [#allocation4], %s282
        %s284 = sand.u32 %s157, 1
        %s285 = smul.addr %s284, 8
        %s286 = scalar_lea.vmem [#allocation8], %s285
        %v287 = vld [vmem:[%s252] sm:$0xff]
        %v288 = vld [vmem:[#allocation5] sm:$0xff]
        %v289 = vld [vmem:[#allocation5 + $0x8] sm:$0xff]
        %v290 = vld [vmem:[#allocation5 + $0x10] sm:$0xff]
        %v291 = vld [vmem:[#allocation5 + $0x18] sm:$0xff]
        %v292 = vld [vmem:[%s2] sm:$0x1]
        %v294 = vlaneseq
        %v295 = vshrl.u32 %v294, 7
        %v296 = vsub.s32 0, %v295
        %v297 = vrot.slane %v292, %v296
        %vm299 = vcmask 261120
        %v301 = vsel %vm299, %v287, 0
        %303 = vmatprep.subr.mxu0 0.0
        %304 = vmatpush1.msra.mxu0 %v288
        %305 = vmatprep.subr.mxu0 0.0
        %306 = vmatpush1.msra.mxu0 %v289
        %307 = vmatprep.subr.mxu0 0.0
        %308 = vmatpush1.msra.mxu0 %v290
        %309 = vmatprep.subr.mxu0 0.0
        %310 = vmatpush1.msra.mxu0 %v291
        %311 = vmatprep.subr.mxu0 0.0
        %312 = vmatpush1.msra.mxu0 0.0
        %313 = vmatprep.subr.mxu0 0.0
        %314 = vmatpush1.msra.mxu0 0.0
        %315 = vmatprep.subr.mxu0 0.0
        %316 = vmatpush1.msra.mxu0 0.0
        %317 = vmatprep.subr.mxu0 0.0
        %318 = vmatpush1.msra.mxu0 0.0
        %319 = vmatprep.subr.mxu0 0.0
        %320 = vmatpush1.msra.mxu0 0.0
        %321 = vmatprep.subr.mxu0 0.0
        %322 = vmatpush1.msra.mxu0 0.0
        %323 = vmatprep.subr.mxu0 0.0
        %324 = vmatpush1.msra.mxu0 0.0
        %325 = vmatprep.subr.mxu0 0.0
        %326 = vmatpush1.msra.mxu0 0.0
        %327 = vmatprep.subr.mxu0 0.0
        %328 = vmatpush1.msra.mxu0 0.0
        %329 = vmatprep.subr.mxu0 0.0
        %330 = vmatpush1.msra.mxu0 0.0
        %331 = vmatprep.subr.mxu0 0.0
        %332 = vmatpush1.msra.mxu0 0.0
        %333 = vmatprep.subr.mxu0 0.0
        %334 = vmatpush1.msra.mxu0 0.0
        %335 = vmatprep.subr.mxu0 0.0
        %336 = vmatpush1.msra.mxu0 0.0
        %337 = vmatprep.subr.mxu0 0.0
        %338 = vmatpush1.msra.mxu0 0.0
        %339 = vmatprep.subr.mxu0 0.0
        %340 = vmatpush1.msra.mxu0 0.0
        %341 = vmatprep.subr.mxu0 0.0
        %342 = vmatpush1.msra.mxu0 0.0
        %343 = vmatprep.subr.mxu0 0.0
        %344 = vmatpush1.msra.mxu0 0.0
        %345 = vmatprep.subr.mxu0 0.0
        %346 = vmatpush1.msra.mxu0 0.0
        %347 = vmatprep.subr.mxu0 0.0
        %348 = vmatpush1.msra.mxu0 0.0
        %349 = vmatprep.subr.mxu0 0.0
        %350 = vmatpush1.msra.mxu0 0.0
        %351 = vmatprep.subr.mxu0 0.0
        %352 = vmatpush1.msra.mxu0 0.0
        %353 = vmatprep.subr.mxu0 0.0
        %354 = vmatpush1.msra.mxu0 0.0
        %355 = vmatprep.subr.mxu0 0.0
        %356 = vmatpush1.msra.mxu0 0.0
        %357 = vmatprep.subr.mxu0 0.0
        %358 = vmatpush1.msra.mxu0 0.0
        %359 = vmatprep.subr.mxu0 0.0
        %360 = vmatpush1.msra.mxu0 0.0
        %361 = vmatprep.subr.mxu0 0.0
        %362 = vmatpush1.msra.mxu0 0.0
        %363 = vmatprep.subr.mxu0 0.0
        %364 = vmatpush1.msra.mxu0 0.0
        %365 = vmatprep.subr.mxu0 0.0
        %366 = vmatpush1.msra.mxu0 0.0
        %367 = vmatprep.mubr.f32.mxu0 0.0
        %368 = vmatmul.mubr.f32.gmra.mrb[0].mxu0 %v301
        %v369 = vpop.f32.mrb[0].mxu0
        %v370 = vadd.f32 %v297, %v369
        %v371 = vpop.f32.mrb[0].mxu0
        %372 = vdwg.mxu0
        %374 = vrot.lane.b32.xlu0 %v370, 96
        %v375 = vpop.permute.xlu0 %374
        %vm376 = vcmask 64512
        %v377 = vsel %vm376, %v370, 0
        %v379 = vsel %vm376, %v375, 0
        %381 = vmatprep.subr.mxu0 0.0
        %382 = vmatpush1.xpose.msra.mxu0 %v379
        %383 = vmatprep.subr.mxu0 0.0
        %384 = vmatpush1.xpose.msra.mxu0 0.0
        %385 = vmatprep.subr.mxu0 0.0
        %386 = vmatpush1.xpose.msra.mxu0 0.0
        %387 = vmatprep.subr.mxu0 0.0
        %388 = vmatpush1.xpose.msra.mxu0 0.0
        %389 = vmatprep.subr.mxu0 0.0
        %390 = vmatpush1.xpose.msra.mxu0 0.0
        %391 = vmatprep.subr.mxu0 0.0
        %392 = vmatpush1.xpose.msra.mxu0 0.0
        %393 = vmatprep.subr.mxu0 0.0
        %394 = vmatpush1.xpose.msra.mxu0 0.0
        %395 = vmatprep.subr.mxu0 0.0
        %396 = vmatpush1.xpose.msra.mxu0 0.0
        %397 = vmatprep.subr.mxu0 0.0
        %398 = vmatpush1.xpose.msra.mxu0 0.0
        %399 = vmatprep.subr.mxu0 0.0
        %400 = vmatpush1.xpose.msra.mxu0 0.0
        %401 = vmatprep.subr.mxu0 0.0
        %402 = vmatpush1.xpose.msra.mxu0 0.0
        %403 = vmatprep.subr.mxu0 0.0
        %404 = vmatpush1.xpose.msra.mxu0 0.0
        %405 = vmatprep.subr.mxu0 0.0
        %406 = vmatpush1.xpose.msra.mxu0 0.0
        %407 = vmatprep.subr.mxu0 0.0
        %408 = vmatpush1.xpose.msra.mxu0 0.0
        %409 = vmatprep.subr.mxu0 0.0
        %410 = vmatpush1.xpose.msra.mxu0 0.0
        %411 = vmatprep.subr.mxu0 0.0
        %412 = vmatpush1.xpose.msra.mxu0 0.0
        %413 = vmatprep.subr.mxu0 0.0
        %414 = vmatpush1.xpose.msra.mxu0 0.0
        %415 = vmatprep.subr.mxu0 0.0
        %416 = vmatpush1.xpose.msra.mxu0 0.0
        %417 = vmatprep.subr.mxu0 0.0
        %418 = vmatpush1.xpose.msra.mxu0 0.0
        %419 = vmatprep.subr.mxu0 0.0
        %420 = vmatpush1.xpose.msra.mxu0 0.0
        %421 = vmatprep.subr.mxu0 0.0
        %422 = vmatpush1.xpose.msra.mxu0 0.0
        %423 = vmatprep.subr.mxu0 0.0
        %424 = vmatpush1.xpose.msra.mxu0 0.0
        %425 = vmatprep.subr.mxu0 0.0
        %426 = vmatpush1.xpose.msra.mxu0 0.0
        %427 = vmatprep.subr.mxu0 0.0
        %428 = vmatpush1.xpose.msra.mxu0 0.0
        %429 = vmatprep.subr.mxu0 0.0
        %430 = vmatpush1.xpose.msra.mxu0 0.0
        %431 = vmatprep.subr.mxu0 0.0
        %432 = vmatpush1.xpose.msra.mxu0 0.0
        %433 = vmatprep.subr.mxu0 0.0
        %434 = vmatpush1.xpose.msra.mxu0 0.0
        %435 = vmatprep.subr.mxu0 0.0
        %436 = vmatpush1.xpose.msra.mxu0 0.0
        %437 = vmatprep.subr.mxu0 0.0
        %438 = vmatpush1.xpose.msra.mxu0 0.0
        %439 = vmatprep.subr.mxu0 0.0
        %440 = vmatpush1.xpose.msra.mxu0 0.0
        %441 = vmatprep.subr.mxu0 0.0
        %442 = vmatpush1.xpose.msra.mxu0 0.0
        %443 = vmatprep.subr.mxu0 0.0
        %444 = vmatpush1.xpose.msra.mxu0 0.0
        %445 = vmatprep.mubr.f32.mxu0 0.0
        %446 = vmatmul.mubr.f32.gmra.mrb[0].mxu0 %v377
        %v447 = vpop.f32.mrb[0].mxu0
        %v448 = vadd.f32 0.0, %v447
        %v449 = vpop.f32.mrb[0].mxu0
        %450 = vdwg.mxu0
        %v451 = vsel %vm376, %v448, -inf
        %452 = vmax.xlane.f32.xlu0 %v451
        %v453 = vpop.xlane.xlu0 %452
        %v454 = vsub.f32 %v448, %v453
        %v455 = vmul.f32 %v454, 1.442695
        %v456 = vpow.pop %v455
        %v457 = vsel %vm376, %v456, 0.0
        %458 = vadd.xlane.f32.xlu0 %v457
        %v459 = vpop.xlane.xlu0 %458
        %v460 = vrcp.pop %v459
        %v461 = vmul.f32 %v456, %v460
        %462 = vrot.lane.b32.xlu0 %v370, 64
        %v463 = vpop.permute.xlu0 %462
        %v466 = vsel %vm376, %v461, 0
        %468 = vmatprep.subr.mxu0 0.0
        %469 = vmatpush1.msra.mxu0 %v463
        %470 = vmatprep.subr.mxu0 0.0
        %471 = vmatpush1.msra.mxu0 0.0
        %472 = vmatprep.subr.mxu0 0.0
        %473 = vmatpush1.msra.mxu0 0.0
        %474 = vmatprep.subr.mxu0 0.0
        %475 = vmatpush1.msra.mxu0 0.0
        %476 = vmatprep.subr.mxu0 0.0
        %477 = vmatpush1.msra.mxu0 0.0
        %478 = vmatprep.subr.mxu0 0.0
        %479 = vmatpush1.msra.mxu0 0.0
        %480 = vmatprep.subr.mxu0 0.0
        %481 = vmatpush1.msra.mxu0 0.0
        %482 = vmatprep.subr.mxu0 0.0
        %483 = vmatpush1.msra.mxu0 0.0
        %484 = vmatprep.subr.mxu0 0.0
        %485 = vmatpush1.msra.mxu0 0.0
        %486 = vmatprep.subr.mxu0 0.0
        %487 = vmatpush1.msra.mxu0 0.0
        %488 = vmatprep.subr.mxu0 0.0
        %489 = vmatpush1.msra.mxu0 0.0
        %490 = vmatprep.subr.mxu0 0.0
        %491 = vmatpush1.msra.mxu0 0.0
        %492 = vmatprep.subr.mxu0 0.0
        %493 = vmatpush1.msra.mxu0 0.0
        %494 = vmatprep.subr.mxu0 0.0
        %495 = vmatpush1.msra.mxu0 0.0
        %496 = vmatprep.subr.mxu0 0.0
        %497 = vmatpush1.msra.mxu0 0.0
        %498 = vmatprep.subr.mxu0 0.0
        %499 = vmatpush1.msra.mxu0 0.0
        %500 = vmatprep.subr.mxu0 0.0
        %501 = vmatpush1.msra.mxu0 0.0
        %502 = vmatprep.subr.mxu0 0.0
        %503 = vmatpush1.msra.mxu0 0.0
        %504 = vmatprep.subr.mxu0 0.0
        %505 = vmatpush1.msra.mxu0 0.0
        %506 = vmatprep.subr.mxu0 0.0
        %507 = vmatpush1.msra.mxu0 0.0
        %508 = vmatprep.subr.mxu0 0.0
        %509 = vmatpush1.msra.mxu0 0.0
        %510 = vmatprep.subr.mxu0 0.0
        %511 = vmatpush1.msra.mxu0 0.0
        %512 = vmatprep.subr.mxu0 0.0
        %513 = vmatpush1.msra.mxu0 0.0
        %514 = vmatprep.subr.mxu0 0.0
        %515 = vmatpush1.msra.mxu0 0.0
        %516 = vmatprep.subr.mxu0 0.0
        %517 = vmatpush1.msra.mxu0 0.0
        %518 = vmatprep.subr.mxu0 0.0
        %519 = vmatpush1.msra.mxu0 0.0
        %520 = vmatprep.subr.mxu0 0.0
        %521 = vmatpush1.msra.mxu0 0.0
        %522 = vmatprep.subr.mxu0 0.0
        %523 = vmatpush1.msra.mxu0 0.0
        %524 = vmatprep.subr.mxu0 0.0
        %525 = vmatpush1.msra.mxu0 0.0
        %526 = vmatprep.subr.mxu0 0.0
        %527 = vmatpush1.msra.mxu0 0.0
        %528 = vmatprep.subr.mxu0 0.0
        %529 = vmatpush1.msra.mxu0 0.0
        %530 = vmatprep.subr.mxu0 0.0
        %531 = vmatpush1.msra.mxu0 0.0
        %532 = vmatprep.mubr.f32.mxu0 0.0
        %533 = vmatmul.mubr.f32.gmra.mrb[0].mxu0 %v466
        %v534 = vpop.f32.mrb[0].mxu0
        %v535 = vadd.f32 0.0, %v534
        %v536 = vpop.f32.mrb[0].mxu0
        %537 = vdwg.mxu0
        %538 = vrot.lane.b32.xlu0 %v370, 120
        %v539 = vpop.permute.xlu0 %538
        %540 = vrot.lane.b32.xlu0 %v370, 88
        %v541 = vpop.permute.xlu0 %540
        %v542 = vsel %vm376, %v539, 0
        %v544 = vsel %vm376, %v541, 0
        %546 = vmatprep.subr.mxu0 0.0
        %547 = vmatpush1.xpose.msra.mxu0 %v544
        %548 = vmatprep.subr.mxu0 0.0
        %549 = vmatpush1.xpose.msra.mxu0 0.0
        %550 = vmatprep.subr.mxu0 0.0
        %551 = vmatpush1.xpose.msra.mxu0 0.0
        %552 = vmatprep.subr.mxu0 0.0
        %553 = vmatpush1.xpose.msra.mxu0 0.0
        %554 = vmatprep.subr.mxu0 0.0
        %555 = vmatpush1.xpose.msra.mxu0 0.0
        %556 = vmatprep.subr.mxu0 0.0
        %557 = vmatpush1.xpose.msra.mxu0 0.0
        %558 = vmatprep.subr.mxu0 0.0
        %559 = vmatpush1.xpose.msra.mxu0 0.0
        %560 = vmatprep.subr.mxu0 0.0
        %561 = vmatpush1.xpose.msra.mxu0 0.0
        %562 = vmatprep.subr.mxu0 0.0
        %563 = vmatpush1.xpose.msra.mxu0 0.0
        %564 = vmatprep.subr.mxu0 0.0
        %565 = vmatpush1.xpose.msra.mxu0 0.0
        %566 = vmatprep.subr.mxu0 0.0
        %567 = vmatpush1.xpose.msra.mxu0 0.0
        %568 = vmatprep.subr.mxu0 0.0
        %569 = vmatpush1.xpose.msra.mxu0 0.0
        %570 = vmatprep.subr.mxu0 0.0
        %571 = vmatpush1.xpose.msra.mxu0 0.0
        %572 = vmatprep.subr.mxu0 0.0
        %573 = vmatpush1.xpose.msra.mxu0 0.0
        %574 = vmatprep.subr.mxu0 0.0
        %575 = vmatpush1.xpose.msra.mxu0 0.0
        %576 = vmatprep.subr.mxu0 0.0
        %577 = vmatpush1.xpose.msra.mxu0 0.0
        %578 = vmatprep.subr.mxu0 0.0
        %579 = vmatpush1.xpose.msra.mxu0 0.0
        %580 = vmatprep.subr.mxu0 0.0
        %581 = vmatpush1.xpose.msra.mxu0 0.0
        %582 = vmatprep.subr.mxu0 0.0
        %583 = vmatpush1.xpose.msra.mxu0 0.0
        %584 = vmatprep.subr.mxu0 0.0
        %585 = vmatpush1.xpose.msra.mxu0 0.0
        %586 = vmatprep.subr.mxu0 0.0
        %587 = vmatpush1.xpose.msra.mxu0 0.0
        %588 = vmatprep.subr.mxu0 0.0
        %589 = vmatpush1.xpose.msra.mxu0 0.0
        %590 = vmatprep.subr.mxu0 0.0
        %591 = vmatpush1.xpose.msra.mxu0 0.0
        %592 = vmatprep.subr.mxu0 0.0
        %593 = vmatpush1.xpose.msra.mxu0 0.0
        %594 = vmatprep.subr.mxu0 0.0
        %595 = vmatpush1.xpose.msra.mxu0 0.0
        %596 = vmatprep.subr.mxu0 0.0
        %597 = vmatpush1.xpose.msra.mxu0 0.0
        %598 = vmatprep.subr.mxu0 0.0
        %599 = vmatpush1.xpose.msra.mxu0 0.0
        %600 = vmatprep.subr.mxu0 0.0
        %601 = vmatpush1.xpose.msra.mxu0 0.0
        %602 = vmatprep.subr.mxu0 0.0
        %603 = vmatpush1.xpose.msra.mxu0 0.0
        %604 = vmatprep.subr.mxu0 0.0
        %605 = vmatpush1.xpose.msra.mxu0 0.0
        %606 = vmatprep.subr.mxu0 0.0
        %607 = vmatpush1.xpose.msra.mxu0 0.0
        %608 = vmatprep.subr.mxu0 0.0
        %609 = vmatpush1.xpose.msra.mxu0 0.0
        %610 = vmatprep.mubr.f32.mxu0 0.0
        %611 = vmatmul.mubr.f32.gmra.mrb[0].mxu0 %v542
        %v612 = vpop.f32.mrb[0].mxu0
        %v613 = vadd.f32 0.0, %v612
        %v614 = vpop.f32.mrb[0].mxu0
        %615 = vdwg.mxu0
        %v616 = vsel %vm376, %v613, -inf
        %617 = vmax.xlane.f32.xlu0 %v616
        %v618 = vpop.xlane.xlu0 %617
        %v619 = vsub.f32 %v613, %v618
        %v620 = vmul.f32 %v619, 1.442695
        %v621 = vpow.pop %v620
        %v622 = vsel %vm376, %v621, 0.0
        %623 = vadd.xlane.f32.xlu0 %v622
        %v624 = vpop.xlane.xlu0 %623
        %v625 = vrcp.pop %v624
        %v626 = vmul.f32 %v621, %v625
        %627 = vrot.lane.b32.xlu0 %v370, 56
        %v628 = vpop.permute.xlu0 %627
        %v631 = vsel %vm376, %v626, 0
        %633 = vmatprep.subr.mxu0 0.0
        %634 = vmatpush1.msra.mxu0 %v628
        %635 = vmatprep.subr.mxu0 0.0
        %636 = vmatpush1.msra.mxu0 0.0
        %637 = vmatprep.subr.mxu0 0.0
        %638 = vmatpush1.msra.mxu0 0.0
        %639 = vmatprep.subr.mxu0 0.0
        %640 = vmatpush1.msra.mxu0 0.0
        %641 = vmatprep.subr.mxu0 0.0
        %642 = vmatpush1.msra.mxu0 0.0
        %643 = vmatprep.subr.mxu0 0.0
        %644 = vmatpush1.msra.mxu0 0.0
        %645 = vmatprep.subr.mxu0 0.0
        %646 = vmatpush1.msra.mxu0 0.0
        %647 = vmatprep.subr.mxu0 0.0
        %648 = vmatpush1.msra.mxu0 0.0
        %649 = vmatprep.subr.mxu0 0.0
        %650 = vmatpush1.msra.mxu0 0.0
        %651 = vmatprep.subr.mxu0 0.0
        %652 = vmatpush1.msra.mxu0 0.0
        %653 = vmatprep.subr.mxu0 0.0
        %654 = vmatpush1.msra.mxu0 0.0
        %655 = vmatprep.subr.mxu0 0.0
        %656 = vmatpush1.msra.mxu0 0.0
        %657 = vmatprep.subr.mxu0 0.0
        %658 = vmatpush1.msra.mxu0 0.0
        %659 = vmatprep.subr.mxu0 0.0
        %660 = vmatpush1.msra.mxu0 0.0
        %661 = vmatprep.subr.mxu0 0.0
        %662 = vmatpush1.msra.mxu0 0.0
        %663 = vmatprep.subr.mxu0 0.0
        %664 = vmatpush1.msra.mxu0 0.0
        %665 = vmatprep.subr.mxu0 0.0
        %666 = vmatpush1.msra.mxu0 0.0
        %667 = vmatprep.subr.mxu0 0.0
        %668 = vmatpush1.msra.mxu0 0.0
        %669 = vmatprep.subr.mxu0 0.0
        %670 = vmatpush1.msra.mxu0 0.0
        %671 = vmatprep.subr.mxu0 0.0
        %672 = vmatpush1.msra.mxu0 0.0
        %673 = vmatprep.subr.mxu0 0.0
        %674 = vmatpush1.msra.mxu0 0.0
        %675 = vmatprep.subr.mxu0 0.0
        %676 = vmatpush1.msra.mxu0 0.0
        %677 = vmatprep.subr.mxu0 0.0
        %678 = vmatpush1.msra.mxu0 0.0
        %679 = vmatprep.subr.mxu0 0.0
        %680 = vmatpush1.msra.mxu0 0.0
        %681 = vmatprep.subr.mxu0 0.0
        %682 = vmatpush1.msra.mxu0 0.0
        %683 = vmatprep.subr.mxu0 0.0
        %684 = vmatpush1.msra.mxu0 0.0
        %685 = vmatprep.subr.mxu0 0.0
        %686 = vmatpush1.msra.mxu0 0.0
        %687 = vmatprep.subr.mxu0 0.0
        %688 = vmatpush1.msra.mxu0 0.0
        %689 = vmatprep.subr.mxu0 0.0
        %690 = vmatpush1.msra.mxu0 0.0
        %691 = vmatprep.subr.mxu0 0.0
        %692 = vmatpush1.msra.mxu0 0.0
        %693 = vmatprep.subr.mxu0 0.0
        %694 = vmatpush1.msra.mxu0 0.0
        %695 = vmatprep.subr.mxu0 0.0
        %696 = vmatpush1.msra.mxu0 0.0
        %697 = vmatprep.mubr.f32.mxu0 0.0
        %698 = vmatmul.mubr.f32.gmra.mrb[0].mxu0 %v631
        %v699 = vpop.f32.mrb[0].mxu0
        %v700 = vadd.f32 0.0, %v699
        %v701 = vpop.f32.mrb[0].mxu0
        %702 = vdwg.mxu0
        %703 = vrot.lane.b32.xlu0 %v370, 112
        %v704 = vpop.permute.xlu0 %703
        %705 = vrot.lane.b32.xlu0 %v370, 80
        %v706 = vpop.permute.xlu0 %705
        %v707 = vsel %vm376, %v704, 0
        %v709 = vsel %vm376, %v706, 0
        %711 = vmatprep.subr.mxu0 0.0
        %712 = vmatpush1.xpose.msra.mxu0 %v709
        %713 = vmatprep.subr.mxu0 0.0
        %714 = vmatpush1.xpose.msra.mxu0 0.0
        %715 = vmatprep.subr.mxu0 0.0
        %716 = vmatpush1.xpose.msra.mxu0 0.0
        %717 = vmatprep.subr.mxu0 0.0
        %718 = vmatpush1.xpose.msra.mxu0 0.0
        %719 = vmatprep.subr.mxu0 0.0
        %720 = vmatpush1.xpose.msra.mxu0 0.0
        %721 = vmatprep.subr.mxu0 0.0
        %722 = vmatpush1.xpose.msra.mxu0 0.0
        %723 = vmatprep.subr.mxu0 0.0
        %724 = vmatpush1.xpose.msra.mxu0 0.0
        %725 = vmatprep.subr.mxu0 0.0
        %726 = vmatpush1.xpose.msra.mxu0 0.0
        %727 = vmatprep.subr.mxu0 0.0
        %728 = vmatpush1.xpose.msra.mxu0 0.0
        %729 = vmatprep.subr.mxu0 0.0
        %730 = vmatpush1.xpose.msra.mxu0 0.0
        %731 = vmatprep.subr.mxu0 0.0
        %732 = vmatpush1.xpose.msra.mxu0 0.0
        %733 = vmatprep.subr.mxu0 0.0
        %734 = vmatpush1.xpose.msra.mxu0 0.0
        %735 = vmatprep.subr.mxu0 0.0
        %736 = vmatpush1.xpose.msra.mxu0 0.0
        %737 = vmatprep.subr.mxu0 0.0
        %738 = vmatpush1.xpose.msra.mxu0 0.0
        %739 = vmatprep.subr.mxu0 0.0
        %740 = vmatpush1.xpose.msra.mxu0 0.0
        %741 = vmatprep.subr.mxu0 0.0
        %742 = vmatpush1.xpose.msra.mxu0 0.0
        %743 = vmatprep.subr.mxu0 0.0
        %744 = vmatpush1.xpose.msra.mxu0 0.0
        %745 = vmatprep.subr.mxu0 0.0
        %746 = vmatpush1.xpose.msra.mxu0 0.0
        %747 = vmatprep.subr.mxu0 0.0
        %748 = vmatpush1.xpose.msra.mxu0 0.0
        %749 = vmatprep.subr.mxu0 0.0
        %750 = vmatpush1.xpose.msra.mxu0 0.0
        %751 = vmatprep.subr.mxu0 0.0
        %752 = vmatpush1.xpose.msra.mxu0 0.0
        %753 = vmatprep.subr.mxu0 0.0
        %754 = vmatpush1.xpose.msra.mxu0 0.0
        %755 = vmatprep.subr.mxu0 0.0
        %756 = vmatpush1.xpose.msra.mxu0 0.0
        %757 = vmatprep.subr.mxu0 0.0
        %758 = vmatpush1.xpose.msra.mxu0 0.0
        %759 = vmatprep.subr.mxu0 0.0
        %760 = vmatpush1.xpose.msra.mxu0 0.0
        %761 = vmatprep.subr.mxu0 0.0
        %762 = vmatpush1.xpose.msra.mxu0 0.0
        %763 = vmatprep.subr.mxu0 0.0
        %764 = vmatpush1.xpose.msra.mxu0 0.0
        %765 = vmatprep.subr.mxu0 0.0
        %766 = vmatpush1.xpose.msra.mxu0 0.0
        %767 = vmatprep.subr.mxu0 0.0
        %768 = vmatpush1.xpose.msra.mxu0 0.0
        %769 = vmatprep.subr.mxu0 0.0
        %770 = vmatpush1.xpose.msra.mxu0 0.0
        %771 = vmatprep.subr.mxu0 0.0
        %772 = vmatpush1.xpose.msra.mxu0 0.0
        %773 = vmatprep.subr.mxu0 0.0
        %774 = vmatpush1.xpose.msra.mxu0 0.0
        %775 = vmatprep.mubr.f32.mxu0 0.0
        %776 = vmatmul.mubr.f32.gmra.mrb[0].mxu0 %v707
        %v777 = vpop.f32.mrb[0].mxu0
        %v778 = vadd.f32 0.0, %v777
        %v779 = vpop.f32.mrb[0].mxu0
        %780 = vdwg.mxu0
        %v781 = vsel %vm376, %v778, -inf
        %782 = vmax.xlane.f32.xlu0 %v781
        %v783 = vpop.xlane.xlu0 %782
        %v784 = vsub.f32 %v778, %v783
        %v785 = vmul.f32 %v784, 1.442695
        %v786 = vpow.pop %v785
        %v787 = vsel %vm376, %v786, 0.0
        %788 = vadd.xlane.f32.xlu0 %v787
        %v789 = vpop.xlane.xlu0 %788
        %v790 = vrcp.pop %v789
        %v791 = vmul.f32 %v786, %v790
        %792 = vrot.lane.b32.xlu0 %v370, 48
        %v793 = vpop.permute.xlu0 %792
        %v796 = vsel %vm376, %v791, 0
        %798 = vmatprep.subr.mxu0 0.0
        %799 = vmatpush1.msra.mxu0 %v793
        %800 = vmatprep.subr.mxu0 0.0
        %801 = vmatpush1.msra.mxu0 0.0
        %802 = vmatprep.subr.mxu0 0.0
        %803 = vmatpush1.msra.mxu0 0.0
        %804 = vmatprep.subr.mxu0 0.0
        %805 = vmatpush1.msra.mxu0 0.0
        %806 = vmatprep.subr.mxu0 0.0
        %807 = vmatpush1.msra.mxu0 0.0
        %808 = vmatprep.subr.mxu0 0.0
        %809 = vmatpush1.msra.mxu0 0.0
        %810 = vmatprep.subr.mxu0 0.0
        %811 = vmatpush1.msra.mxu0 0.0
        %812 = vmatprep.subr.mxu0 0.0
        %813 = vmatpush1.msra.mxu0 0.0
        %814 = vmatprep.subr.mxu0 0.0
        %815 = vmatpush1.msra.mxu0 0.0
        %816 = vmatprep.subr.mxu0 0.0
        %817 = vmatpush1.msra.mxu0 0.0
        %818 = vmatprep.subr.mxu0 0.0
        %819 = vmatpush1.msra.mxu0 0.0
        %820 = vmatprep.subr.mxu0 0.0
        %821 = vmatpush1.msra.mxu0 0.0
        %822 = vmatprep.subr.mxu0 0.0
        %823 = vmatpush1.msra.mxu0 0.0
        %824 = vmatprep.subr.mxu0 0.0
        %825 = vmatpush1.msra.mxu0 0.0
        %826 = vmatprep.subr.mxu0 0.0
        %827 = vmatpush1.msra.mxu0 0.0
        %828 = vmatprep.subr.mxu0 0.0
        %829 = vmatpush1.msra.mxu0 0.0
        %830 = vmatprep.subr.mxu0 0.0
        %831 = vmatpush1.msra.mxu0 0.0
        %832 = vmatprep.subr.mxu0 0.0
        %833 = vmatpush1.msra.mxu0 0.0
        %834 = vmatprep.subr.mxu0 0.0
        %835 = vmatpush1.msra.mxu0 0.0
        %836 = vmatprep.subr.mxu0 0.0
        %837 = vmatpush1.msra.mxu0 0.0
        %838 = vmatprep.subr.mxu0 0.0
        %839 = vmatpush1.msra.mxu0 0.0
        %840 = vmatprep.subr.mxu0 0.0
        %841 = vmatpush1.msra.mxu0 0.0
        %842 = vmatprep.subr.mxu0 0.0
        %843 = vmatpush1.msra.mxu0 0.0
        %844 = vmatprep.subr.mxu0 0.0
        %845 = vmatpush1.msra.mxu0 0.0
        %846 = vmatprep.subr.mxu0 0.0
        %847 = vmatpush1.msra.mxu0 0.0
        %848 = vmatprep.subr.mxu0 0.0
        %849 = vmatpush1.msra.mxu0 0.0
        %850 = vmatprep.subr.mxu0 0.0
        %851 = vmatpush1.msra.mxu0 0.0
        %852 = vmatprep.subr.mxu0 0.0
        %853 = vmatpush1.msra.mxu0 0.0
        %854 = vmatprep.subr.mxu0 0.0
        %855 = vmatpush1.msra.mxu0 0.0
        %856 = vmatprep.subr.mxu0 0.0
        %857 = vmatpush1.msra.mxu0 0.0
        %858 = vmatprep.subr.mxu0 0.0
        %859 = vmatpush1.msra.mxu0 0.0
        %860 = vmatprep.subr.mxu0 0.0
        %861 = vmatpush1.msra.mxu0 0.0
        %862 = vmatprep.mubr.f32.mxu0 0.0
        %863 = vmatmul.mubr.f32.gmra.mrb[0].mxu0 %v796
        %v864 = vpop.f32.mrb[0].mxu0
        %v865 = vadd.f32 0.0, %v864
        %v866 = vpop.f32.mrb[0].mxu0
        %867 = vdwg.mxu0
        %868 = vrot.lane.b32.xlu0 %v370, 104
        %v869 = vpop.permute.xlu0 %868
        %870 = vrot.lane.b32.xlu0 %v370, 72
        %v871 = vpop.permute.xlu0 %870
        %v872 = vsel %vm376, %v869, 0
        %v874 = vsel %vm376, %v871, 0
        %876 = vmatprep.subr.mxu0 0.0
        %877 = vmatpush1.xpose.msra.mxu0 %v874
        %878 = vmatprep.subr.mxu0 0.0
        %879 = vmatpush1.xpose.msra.mxu0 0.0
        %880 = vmatprep.subr.mxu0 0.0
        %881 = vmatpush1.xpose.msra.mxu0 0.0
        %882 = vmatprep.subr.mxu0 0.0
        %883 = vmatpush1.xpose.msra.mxu0 0.0
        %884 = vmatprep.subr.mxu0 0.0
        %885 = vmatpush1.xpose.msra.mxu0 0.0
        %886 = vmatprep.subr.mxu0 0.0
        %887 = vmatpush1.xpose.msra.mxu0 0.0
        %888 = vmatprep.subr.mxu0 0.0
        %889 = vmatpush1.xpose.msra.mxu0 0.0
        %890 = vmatprep.subr.mxu0 0.0
        %891 = vmatpush1.xpose.msra.mxu0 0.0
        %892 = vmatprep.subr.mxu0 0.0
        %893 = vmatpush1.xpose.msra.mxu0 0.0
        %894 = vmatprep.subr.mxu0 0.0
        %895 = vmatpush1.xpose.msra.mxu0 0.0
        %896 = vmatprep.subr.mxu0 0.0
        %897 = vmatpush1.xpose.msra.mxu0 0.0
        %898 = vmatprep.subr.mxu0 0.0
        %899 = vmatpush1.xpose.msra.mxu0 0.0
        %900 = vmatprep.subr.mxu0 0.0
        %901 = vmatpush1.xpose.msra.mxu0 0.0
        %902 = vmatprep.subr.mxu0 0.0
        %903 = vmatpush1.xpose.msra.mxu0 0.0
        %904 = vmatprep.subr.mxu0 0.0
        %905 = vmatpush1.xpose.msra.mxu0 0.0
        %906 = vmatprep.subr.mxu0 0.0
        %907 = vmatpush1.xpose.msra.mxu0 0.0
        %908 = vmatprep.subr.mxu0 0.0
        %909 = vmatpush1.xpose.msra.mxu0 0.0
        %910 = vmatprep.subr.mxu0 0.0
        %911 = vmatpush1.xpose.msra.mxu0 0.0
        %912 = vmatprep.subr.mxu0 0.0
        %913 = vmatpush1.xpose.msra.mxu0 0.0
        %914 = vmatprep.subr.mxu0 0.0
        %915 = vmatpush1.xpose.msra.mxu0 0.0
        %916 = vmatprep.subr.mxu0 0.0
        %917 = vmatpush1.xpose.msra.mxu0 0.0
        %918 = vmatprep.subr.mxu0 0.0
        %919 = vmatpush1.xpose.msra.mxu0 0.0
        %920 = vmatprep.subr.mxu0 0.0
        %921 = vmatpush1.xpose.msra.mxu0 0.0
        %922 = vmatprep.subr.mxu0 0.0
        %923 = vmatpush1.xpose.msra.mxu0 0.0
        %924 = vmatprep.subr.mxu0 0.0
        %925 = vmatpush1.xpose.msra.mxu0 0.0
        %926 = vmatprep.subr.mxu0 0.0
        %927 = vmatpush1.xpose.msra.mxu0 0.0
        %928 = vmatprep.subr.mxu0 0.0
        %929 = vmatpush1.xpose.msra.mxu0 0.0
        %930 = vmatprep.subr.mxu0 0.0
        %931 = vmatpush1.xpose.msra.mxu0 0.0
        %932 = vmatprep.subr.mxu0 0.0
        %933 = vmatpush1.xpose.msra.mxu0 0.0
        %934 = vmatprep.subr.mxu0 0.0
        %935 = vmatpush1.xpose.msra.mxu0 0.0
        %936 = vmatprep.subr.mxu0 0.0
        %937 = vmatpush1.xpose.msra.mxu0 0.0
        %938 = vmatprep.subr.mxu0 0.0
        %939 = vmatpush1.xpose.msra.mxu0 0.0
        %940 = vmatprep.mubr.f32.mxu0 0.0
        %941 = vmatmul.mubr.f32.gmra.mrb[0].mxu0 %v872
        %v942 = vpop.f32.mrb[0].mxu0
        %v943 = vadd.f32 0.0, %v942
        %v944 = vpop.f32.mrb[0].mxu0
        %945 = vdwg.mxu0
        %v946 = vsel %vm376, %v943, -inf
        %947 = vmax.xlane.f32.xlu0 %v946
        %v948 = vpop.xlane.xlu0 %947
        %v949 = vsub.f32 %v943, %v948
        %v950 = vmul.f32 %v949, 1.442695
        %v951 = vpow.pop %v950
        %v952 = vsel %vm376, %v951, 0.0
        %953 = vadd.xlane.f32.xlu0 %v952
        %v954 = vpop.xlane.xlu0 %953
        %v955 = vrcp.pop %v954
        %v956 = vmul.f32 %v951, %v955
        %957 = vrot.lane.b32.xlu0 %v370, 40
        %v958 = vpop.permute.xlu0 %957
        %v961 = vsel %vm376, %v956, 0
        %963 = vmatprep.subr.mxu0 0.0
        %964 = vmatpush1.msra.mxu0 %v958
        %965 = vmatprep.subr.mxu0 0.0
        %966 = vmatpush1.msra.mxu0 0.0
        %967 = vmatprep.subr.mxu0 0.0
        %968 = vmatpush1.msra.mxu0 0.0
        %969 = vmatprep.subr.mxu0 0.0
        %970 = vmatpush1.msra.mxu0 0.0
        %971 = vmatprep.subr.mxu0 0.0
        %972 = vmatpush1.msra.mxu0 0.0
        %973 = vmatprep.subr.mxu0 0.0
        %974 = vmatpush1.msra.mxu0 0.0
        %975 = vmatprep.subr.mxu0 0.0
        %976 = vmatpush1.msra.mxu0 0.0
        %977 = vmatprep.subr.mxu0 0.0
        %978 = vmatpush1.msra.mxu0 0.0
        %979 = vmatprep.subr.mxu0 0.0
        %980 = vmatpush1.msra.mxu0 0.0
        %981 = vmatprep.subr.mxu0 0.0
        %982 = vmatpush1.msra.mxu0 0.0
        %983 = vmatprep.subr.mxu0 0.0
        %984 = vmatpush1.msra.mxu0 0.0
        %985 = vmatprep.subr.mxu0 0.0
        %986 = vmatpush1.msra.mxu0 0.0
        %987 = vmatprep.subr.mxu0 0.0
        %988 = vmatpush1.msra.mxu0 0.0
        %989 = vmatprep.subr.mxu0 0.0
        %990 = vmatpush1.msra.mxu0 0.0
        %991 = vmatprep.subr.mxu0 0.0
        %992 = vmatpush1.msra.mxu0 0.0
        %993 = vmatprep.subr.mxu0 0.0
        %994 = vmatpush1.msra.mxu0 0.0
        %995 = vmatprep.subr.mxu0 0.0
        %996 = vmatpush1.msra.mxu0 0.0
        %997 = vmatprep.subr.mxu0 0.0
        %998 = vmatpush1.msra.mxu0 0.0
        %999 = vmatprep.subr.mxu0 0.0
        %1000 = vmatpush1.msra.mxu0 0.0
        %1001 = vmatprep.subr.mxu0 0.0
        %1002 = vmatpush1.msra.mxu0 0.0
        %1003 = vmatprep.subr.mxu0 0.0
        %1004 = vmatpush1.msra.mxu0 0.0
        %1005 = vmatprep.subr.mxu0 0.0
        %1006 = vmatpush1.msra.mxu0 0.0
        %1007 = vmatprep.subr.mxu0 0.0
        %1008 = vmatpush1.msra.mxu0 0.0
        %1009 = vmatprep.subr.mxu0 0.0
        %1010 = vmatpush1.msra.mxu0 0.0
        %1011 = vmatprep.subr.mxu0 0.0
        %1012 = vmatpush1.msra.mxu0 0.0
        %1013 = vmatprep.subr.mxu0 0.0
        %1014 = vmatpush1.msra.mxu0 0.0
        %1015 = vmatprep.subr.mxu0 0.0
        %1016 = vmatpush1.msra.mxu0 0.0
        %1017 = vmatprep.subr.mxu0 0.0
        %1018 = vmatpush1.msra.mxu0 0.0
        %1019 = vmatprep.subr.mxu0 0.0
        %1020 = vmatpush1.msra.mxu0 0.0
        %1021 = vmatprep.subr.mxu0 0.0
        %1022 = vmatpush1.msra.mxu0 0.0
        %1023 = vmatprep.subr.mxu0 0.0
        %1024 = vmatpush1.msra.mxu0 0.0
        %1025 = vmatprep.subr.mxu0 0.0
        %1026 = vmatpush1.msra.mxu0 0.0
        %1027 = vmatprep.mubr.f32.mxu0 0.0
        %1028 = vmatmul.mubr.f32.gmra.mrb[0].mxu0 %v961
        %v1029 = vpop.f32.mrb[0].mxu0
        %v1030 = vadd.f32 0.0, %v1029
        %v1031 = vpop.f32.mrb[0].mxu0
        %1032 = vdwg.mxu0
        %1034 = vrot.lane.b32.xlu0 %v700, 8
        %v1035 = vpop.permute.xlu0 %1034
        %1038 = vrot.lane.b32.xlu0 %v865, 16
        %v1039 = vpop.permute.xlu0 %1038
        %1042 = vrot.lane.b32.xlu0 %v1030, 24
        %v1043 = vpop.permute.xlu0 %1042
        %v1045 = vsel %vm376, %v535, %v1035
        %vm1046 = vcmask 130048
        %v1047 = vsel %vm1046, %v1045, %v1039
        %vm1048 = vcmask 195584
        %v1049 = vsel %vm1048, %v1047, %v1043
        %v1050 = vld [vmem:[#allocation7] sm:$0xff]
        %v1051 = vld [vmem:[#allocation7 + $0x8] sm:$0xff]
        %v1052 = vld [vmem:[#allocation7 + $0x10] sm:$0xff]
        %v1053 = vld [vmem:[#allocation7 + $0x18] sm:$0xff]
        %v1054 = vld [vmem:[%s4] sm:$0x1]
        %v1056 = vlaneseq
        %v1057 = vshrl.u32 %v1056, 7
        %v1058 = vsub.s32 0, %v1057
        %v1059 = vrot.slane %v1054, %v1058
        %v1062 = vsel %vm299, %v1049, 0
        %1064 = vmatprep.subr.mxu0 0.0
        %1065 = vmatpush1.msra.mxu0 %v1050
        %1066 = vmatprep.subr.mxu0 0.0
        %1067 = vmatpush1.msra.mxu0 %v1051
        %1068 = vmatprep.subr.mxu0 0.0
        %1069 = vmatpush1.msra.mxu0 %v1052
        %1070 = vmatprep.subr.mxu0 0.0
        %1071 = vmatpush1.msra.mxu0 %v1053
        %1072 = vmatprep.subr.mxu0 0.0
        %1073 = vmatpush1.msra.mxu0 0.0
        %1074 = vmatprep.subr.mxu0 0.0
        %1075 = vmatpush1.msra.mxu0 0.0
        %1076 = vmatprep.subr.mxu0 0.0
        %1077 = vmatpush1.msra.mxu0 0.0
        %1078 = vmatprep.subr.mxu0 0.0
        %1079 = vmatpush1.msra.mxu0 0.0
        %1080 = vmatprep.subr.mxu0 0.0
        %1081 = vmatpush1.msra.mxu0 0.0
        %1082 = vmatprep.subr.mxu0 0.0
        %1083 = vmatpush1.msra.mxu0 0.0
        %1084 = vmatprep.subr.mxu0 0.0
        %1085 = vmatpush1.msra.mxu0 0.0
        %1086 = vmatprep.subr.mxu0 0.0
        %1087 = vmatpush1.msra.mxu0 0.0
        %1088 = vmatprep.subr.mxu0 0.0
        %1089 = vmatpush1.msra.mxu0 0.0
        %1090 = vmatprep.subr.mxu0 0.0
        %1091 = vmatpush1.msra.mxu0 0.0
        %1092 = vmatprep.subr.mxu0 0.0
        %1093 = vmatpush1.msra.mxu0 0.0
        %1094 = vmatprep.subr.mxu0 0.0
        %1095 = vmatpush1.msra.mxu0 0.0
        %1096 = vmatprep.subr.mxu0 0.0
        %1097 = vmatpush1.msra.mxu0 0.0
        %1098 = vmatprep.subr.mxu0 0.0
        %1099 = vmatpush1.msra.mxu0 0.0
        %1100 = vmatprep.subr.mxu0 0.0
        %1101 = vmatpush1.msra.mxu0 0.0
        %1102 = vmatprep.subr.mxu0 0.0
        %1103 = vmatpush1.msra.mxu0 0.0
        %1104 = vmatprep.subr.mxu0 0.0
        %1105 = vmatpush1.msra.mxu0 0.0
        %1106 = vmatprep.subr.mxu0 0.0
        %1107 = vmatpush1.msra.mxu0 0.0
        %1108 = vmatprep.subr.mxu0 0.0
        %1109 = vmatpush1.msra.mxu0 0.0
        %1110 = vmatprep.subr.mxu0 0.0
        %1111 = vmatpush1.msra.mxu0 0.0
        %1112 = vmatprep.subr.mxu0 0.0
        %1113 = vmatpush1.msra.mxu0 0.0
        %1114 = vmatprep.subr.mxu0 0.0
        %1115 = vmatpush1.msra.mxu0 0.0
        %1116 = vmatprep.subr.mxu0 0.0
        %1117 = vmatpush1.msra.mxu0 0.0
        %1118 = vmatprep.subr.mxu0 0.0
        %1119 = vmatpush1.msra.mxu0 0.0
        %1120 = vmatprep.subr.mxu0 0.0
        %1121 = vmatpush1.msra.mxu0 0.0
        %1122 = vmatprep.subr.mxu0 0.0
        %1123 = vmatpush1.msra.mxu0 0.0
        %1124 = vmatprep.subr.mxu0 0.0
        %1125 = vmatpush1.msra.mxu0 0.0
        %1126 = vmatprep.subr.mxu0 0.0
        %1127 = vmatpush1.msra.mxu0 0.0
        %1128 = vmatprep.mubr.f32.mxu0 0.0
        %1129 = vmatmul.mubr.f32.gmra.mrb[0].mxu0 %v1062
        %v1130 = vpop.f32.mrb[0].mxu0
        %v1131 = vadd.f32 %v1059, %v1130
        %v1132 = vpop.f32.mrb[0].mxu0
        %1133 = vdwg.mxu0
        %1134 = vst.msk [vmem:[%s286] sm:$0xff] %vm299, %v1131
        %s1135 = sand.u32 %s157, 1
        %s1136 = scalar_lea.sflag [#allocation4], %s1135
        %s1137 = sand.u32 %s157, 1
        %s1138 = smul.addr %s1137, 8
        %s1139 = scalar_lea.vmem [#allocation8], %s1138
        // Predicated region
        $region53: #{tpu_custom_call.1} parent=39 // pred_check
          %p1140 = pneg %p167
        $region54: #{tpu_custom_call.1} parent=39 // pred_check_branch
          %1142 = sbr.rel (%p1140) target = $region56
        $region55: #{tpu_custom_call.1} parent=39 // pred_region
          %s1144 = ssub.s32 128, 128
          %1145 = vsyncadd %s1136, %s1144
          %s1146 = smul.addr %s27, 2
          %s1147 = sadd.s32 %s28, %s1146
          %s1148 = smul.addr %s1147, 128
          %s1149 = scalar_lea.hbm %s5, %s1148
          %s1151 = sshll.u32 %s1139, 4
          %s1152 = int_to_ptr.vmem [resolvable:$true] %s1151
          %1154 = dma.vmem_to_hbm [thread:$0]  %s1152, 128, %s1149, %s1136
        $region56: #{tpu_custom_call.1} parent=39 // pred_fallthru
          _
      $region40: #{tpu_custom_call.1} parent=5 // pred_fallthru
        _
      %p1155 = scmp.le.s32.totalorder 2, %s18
      // Predicated region
      $region57: #{tpu_custom_call.1} parent=5 // pred_check
        %p1156 = pneg %p1155
      $region58: #{tpu_custom_call.1} parent=5 // pred_check_branch
        %1158 = sbr.rel (%p1156) target = $region60
      $region59: #{tpu_custom_call.1} parent=5 // pred_region
        %s1159 = ssub.s32 %s18, 2
        // Predicated region
        $region61: #{tpu_custom_call.1} parent=59 // pred_check
          %p1160 = pneg %p173
        $region62: #{tpu_custom_call.1} parent=59 // pred_check_branch
          %1162 = sbr.rel (%p1160) target = $region64
        $region63: #{tpu_custom_call.1} parent=59 // pred_region
          %s1163 = sand.u32 %s158, 1
          %s1164 = scalar_lea.sflag [#allocation4], %s1163
          %s1165 = sand.u32 %s158, 1
          %s1166 = smul.addr %s1165, 8
          %s1167 = scalar_lea.vmem [#allocation8], %s1166
          %1168 = dma.done %s1164, 128
        $region64: #{tpu_custom_call.1} parent=59 // pred_fallthru
          _
      $region60: #{tpu_custom_call.1} parent=5 // pred_fallthru
        _
    $region6: #{tpu_custom_call.1} parent=1 // loop_footer
      %s22 = sadd.s32 1, %s18
    $region7: #{tpu_custom_call.1} parent=1 // loop_footer_branch
      %17 = sbr.rel target = $region3
    $region8: #{tpu_custom_call.1} parent=1 // loop_exit
      _
    %1169 = vsyncpa [#allocation3], 1
    %s1170 = scalar_lea.sflag [#allocation3], 1
    %1171 = vsyncpa %s1170, 1
    %1172 = vsyncpa [#allocation6], 1
    %1173 = vsyncpa [#allocation4], 1
    %s1174 = scalar_lea.sflag [#allocation4], 1
    %1175 = vsyncpa %s1174, 1

</llo_original>
